<compile_context>
chip_gen: v5e
topology: v5e:2x2
jax: 0.10.0
libtpu: 0.0.40
codegen_flags: <defaults>
</compile_context>

<pallas_src>
import functools

import jax
import jax.numpy as jnp
from jax import lax
from jax.experimental import pallas as pl
from jax.experimental.pallas import tpu as pltpu


def _wavenet_fused_kernel(coef_ref, x_ref, o_ref, *, d, w_valid):
    """coef_ref: SMEM (6, 16) f32 rows = [P0, P1, P2, Q0, Q1, Q2].
    x_ref: (1, th, Wp) f32 block.  o_ref: (1, 16, th, Wp) block."""
    x = x_ref[0]                                    # [th, Wp], W on lanes
    th, Wp = x.shape

    # Shifted taps via lane rotation (XLU) + mask; zero beyond the valid range.
    col = lax.broadcasted_iota(jnp.int32, (th, Wp), 1)
    m1 = col < (w_valid - d)                        # w + d  < W
    m2 = col < (w_valid - 2 * d)                    # w + 2d < W
    xs1 = jnp.where(m1, pltpu.roll(x, shift=(Wp - d) % Wp, axis=1), 0.0)
    xs2 = jnp.where(m2, pltpu.roll(x, shift=(Wp - 2 * d) % Wp, axis=1), 0.0)

    # Bias taps hoisted out of the channel loop as full [th, Wp] slabs so the
    # unrolled 16-channel loop does no per-channel broadcast_in_dim.
    m1f = m1.astype(x.dtype)
    m2f = m2.astype(x.dtype)

    # 16 output channels: scalar-broadcast FMAs on the VPU, full-width stores.
    for c in range(16):
        p0 = coef_ref[0, c]
        p1 = coef_ref[1, c]
        p2 = coef_ref[2, c]
        q0 = coef_ref[3, c]
        q1 = coef_ref[4, c]
        q2 = coef_ref[5, c]
        y = x * p0 + xs1 * p1 + xs2 * p2 + m1f * q1 + m2f * q2 + q0
        o_ref[0, c] = y.astype(o_ref.dtype)


def _vmem_capacity_bytes():
    try:
        return int(pltpu.get_tpu_info().vmem_capacity_bytes)
    except Exception:
        return 64 << 20                              # conservative (v7x per-TC)


def _pick_block_rows(H, W, N, *, max_rows=1024):
    """Largest H-tile that fits the generation-aware VMEM budget, with >=2
    grid steps when possible so both v7x TensorCores get work."""
    cap = _vmem_capacity_bytes()
    budget = min(cap * 3 // 8, 56 << 20)             # ~48 MiB on 128 MiB parts, ~24 MiB on v7x
    bytes_per_row = W * 4 * (2 * 1 + 2 * 16 + 10)    # 2x in, 2x out (16 ch), temporaries
    th = min(max_rows, max(1, budget // bytes_per_row), H)
    if th < H:
        th = min(H, max(8, (th // 8) * 8))            # sublane-aligned partial tile
    # Guarantee >=2 grid steps along a "parallel" axis (v7x megacore) when possible.
    if N * pl.cdiv(H, th) < 2 and H > 8:
        th2 = max(8, ((pl.cdiv(H, 2) + 7) // 8) * 8)
        if th2 < th:
            th = th2
    return th


def _fold_params(torch_params):
    """Fold conv1+conv2+conv3 (C_in=1, kernel height 1) into a 3-tap FIR."""
    w1, b1, w2, b2, w3, b3 = torch_params
    w1v = w1.reshape(16)                             # (16,)
    W2_0, W2_1 = w2[:, :, 0, 0], w2[:, :, 0, 1]      # (32, 16) each
    W3_0, W3_1 = w3[:, :, 0, 0], w3[:, :, 0, 1]      # (16, 32) each
    A0, A1 = W2_0 @ w1v, W2_1 @ w1v                  # (32,)
    B0, B1 = W2_0 @ b1, W2_1 @ b1                    # (32,)
    b2e = B0 + b2
    P0 = W3_0 @ A0
    P1 = W3_0 @ A1 + W3_1 @ A0
    P2 = W3_1 @ A1
    Q0 = W3_0 @ b2e + b3
    Q1 = W3_0 @ B1 + W3_1 @ b2e
    Q2 = W3_1 @ B1
    return jnp.stack([P0, P1, P2, Q0, Q1, Q2]).astype(jnp.float32)   # (6, 16)


def wavenet_forward(x_nchw, torch_params, dilation_rate, *, out_dtype=jnp.float32):
    """x_nchw: [N, 1, H, W] f32.  Returns [N, 16, H, W] in `out_dtype` (NCHW).
    out_dtype=jnp.bfloat16 halves HBM writeback; default f32 matches PyTorch."""
    N, C, H, W = x_nchw.shape
    assert C == 1
    d = int(dilation_rate)

    coef = _fold_params(torch_params)                # tiny host-side matvecs
    x3 = x_nchw.reshape(N, H, W)                     # contiguous, free reshape

    # Lane-dense width: pad W up to a multiple of 128 (masks keep math exact).
    Wp = ((W + 127) // 128) * 128
    if Wp != W:
        x3 = jnp.pad(x3, ((0, 0), (0, 0), (0, Wp - W)))

    th = _pick_block_rows(H, Wp, N)
    grid = (N, pl.cdiv(H, th))

    out_itemsize = jnp.dtype(out_dtype).itemsize
    # Actual VMEM need: double-buffered in + out blocks plus ~12 f32 temps.
    block_bytes = th * Wp * (2 * 4 + 2 * 16 * out_itemsize + 12 * 4)
    vmem_limit = max(4 << 20, min(_vmem_capacity_bytes(),
                                  int(block_bytes * 1.25) + (2 << 20)))

    cost = pl.CostEstimate(
        flops=170 * N * H * Wp,
        transcendentals=0,
        bytes_accessed=N * H * Wp * 4 + N * 16 * H * Wp * out_itemsize,
    )

    kernel = functools.partial(_wavenet_fused_kernel, d=d, w_valid=W)
    out = pl.pallas_call(
        kernel,
        out_shape=jax.ShapeDtypeStruct((N, 16, H, Wp), out_dtype),
        grid=grid,
        in_specs=[
            pl.BlockSpec(memory_space=pltpu.MemorySpace.SMEM),      # folded coefs
            pl.BlockSpec((1, th, Wp), lambda n, i: (n, i, 0)),      # input rows
        ],
        out_specs=pl.BlockSpec((1, 16, th, Wp), lambda n, i: (n, 0, i, 0)),
        compiler_params=pltpu.CompilerParams(
            dimension_semantics=("parallel", "parallel"),
            vmem_limit_bytes=vmem_limit,
        ),
        cost_estimate=cost,
    )(coef, x3)

    if Wp != W:
        out = out[..., :W]
    return out                                        # already NCHW: no transpose


def init_params(key):
    """Deterministic params with the exact PyTorch conv shapes."""
    ks = jax.random.split(key, 6)
    w1 = jax.random.normal(ks[0], (16, 1, 1, 1), jnp.float32) * 0.5
    b1 = jax.random.normal(ks[1], (16,), jnp.float32) * 0.1
    w2 = jax.random.normal(ks[2], (32, 16, 1, 2), jnp.float32) * 0.2
    b2 = jax.random.normal(ks[3], (32,), jnp.float32) * 0.1
    w3 = jax.random.normal(ks[4], (16, 32, 1, 2), jnp.float32) * 0.2
    b3 = jax.random.normal(ks[5], (16,), jnp.float32) * 0.1
    return (w1, b1, w2, b2, w3, b3)


def reference_forward(x, torch_params, d):
    """Pure-JAX replica of the PyTorch graph (lax.conv, NCHW) for validation."""
    w1, b1, w2, b2, w3, b3 = torch_params
    dn = ("NCHW", "OIHW", "NCHW")
    y = lax.conv_general_dilated(x, w1, (1, 1), "VALID",
                                 dimension_numbers=dn) + b1[None, :, None, None]
    y = jnp.pad(y, ((0, 0), (0, 0), (0, 0), (0, d)))
    y = lax.conv_general_dilated(y, w2, (1, 1), "VALID", rhs_dilation=(1, d),
                                 dimension_numbers=dn) + b2[None, :, None, None]
    y = jnp.pad(y, ((0, 0), (0, 0), (0, 0), (0, d)))
    y = lax.conv_general_dilated(y, w3, (1, 1), "VALID", rhs_dilation=(1, d),
                                 dimension_numbers=dn) + b3[None, :, None, None]
    return y


if __name__ == "__main__":
    dilation_rate = 2
    N, C, H, W = 2, 1, 16, 128           # NCHW input, W on lanes (lane-dense)

    key = jax.random.PRNGKey(0)
    pkey, xkey = jax.random.split(key)
    params = init_params(pkey)
    x = jax.random.normal(xkey, (N, C, H, W), jnp.float32)

    out = jax.block_until_ready(wavenet_forward(x, params, dilation_rate))
    assert out.shape == (N, 16, H, W), out.shape

    ref = jax.block_until_ready(reference_forward(x, params, dilation_rate))
    max_err = float(jnp.max(jnp.abs(out - ref)))
    assert jnp.allclose(out, ref, atol=1e-4, rtol=1e-4), max_err

    print("KERNEL_OK")
</pallas_src>

<mosaic_0001>
module attributes {stable_mosaic.version = 11 : i64} {
  func.func @_wavenet_fused_kernel(%arg0: i32, %arg1: i32, %arg2: memref<6x16xf32, #tpu.memory_space<smem>>, %arg3: memref<1x16x128xf32, #tpu.memory_space<vmem>>, %arg4: memref<1x16x16x128xf32, #tpu.memory_space<vmem>>) attributes {dimension_semantics = [#tpu.dimension_semantics<parallel>, #tpu.dimension_semantics<parallel>], iteration_bounds = array<i64: 2, 1>, scalar_prefetch = 0 : i64, scratch_operands = 0 : i64, tpu.core_type = #tpu.core_type<tc>, window_params = [{transform_indices = @transform_0, window_bounds = array<i64: 6, 16>}, {transform_indices = @transform_1, window_bounds = array<i64: 1, 16, 128>}, {transform_indices = @transform_2, window_bounds = array<i64: 1, 16, 16, 128>}]} {
    %c0 = arith.constant 0 : index
    %c0_0 = arith.constant 0 : index
    %c0_1 = arith.constant 0 : index
    %0 = vector.load %arg3[%c0, %c0_0, %c0_1] : memref<1x16x128xf32, #tpu.memory_space<vmem>>, vector<1x16x128xf32>
    %1 = vector.shape_cast %0 : vector<1x16x128xf32> to vector<16x128xf32>
    %2 = tpu.iota {dimensions = array<i32: 1>} : vector<16x128xi32>
    %c126_i32 = arith.constant 126 : i32
    %3 = vector.broadcast %c126_i32 : i32 to vector<16x128xi32>
    %4 = arith.cmpi slt, %2, %3 : vector<16x128xi32>
    %c124_i32 = arith.constant 124 : i32
    %5 = vector.broadcast %c124_i32 : i32 to vector<16x128xi32>
    %6 = arith.cmpi slt, %2, %5 : vector<16x128xi32>
    %c126_i32_2 = arith.constant 126 : i32
    %7 = tpu.dynamic_rotate %1 by %c126_i32_2 dim 1 : vector<16x128xf32>, i32 -> vector<16x128xf32>
    %cst = arith.constant 0.000000e+00 : f32
    %8 = vector.broadcast %cst : f32 to vector<16x128xf32>
    %9 = arith.select %4, %7, %8 : vector<16x128xi1>, vector<16x128xf32>
    %c124_i32_3 = arith.constant 124 : i32
    %10 = tpu.dynamic_rotate %1 by %c124_i32_3 dim 1 : vector<16x128xf32>, i32 -> vector<16x128xf32>
    %cst_4 = arith.constant 0.000000e+00 : f32
    %11 = vector.broadcast %cst_4 : f32 to vector<16x128xf32>
    %12 = arith.select %6, %10, %11 : vector<16x128xi1>, vector<16x128xf32>
    %13 = arith.extui %4 : vector<16x128xi1> to vector<16x128xi32>
    %14 = arith.sitofp %13 : vector<16x128xi32> to vector<16x128xf32>
    %15 = arith.extui %6 : vector<16x128xi1> to vector<16x128xi32>
    %16 = arith.sitofp %15 : vector<16x128xi32> to vector<16x128xf32>
    %c0_5 = arith.constant 0 : index
    %c0_6 = arith.constant 0 : index
    %17 = memref.load %arg2[%c0_5, %c0_6] : memref<6x16xf32, #tpu.memory_space<smem>>
    %c1 = arith.constant 1 : index
    %c0_7 = arith.constant 0 : index
    %18 = memref.load %arg2[%c1, %c0_7] : memref<6x16xf32, #tpu.memory_space<smem>>
    %c2 = arith.constant 2 : index
    %c0_8 = arith.constant 0 : index
    %19 = memref.load %arg2[%c2, %c0_8] : memref<6x16xf32, #tpu.memory_space<smem>>
    %c3 = arith.constant 3 : index
    %c0_9 = arith.constant 0 : index
    %20 = memref.load %arg2[%c3, %c0_9] : memref<6x16xf32, #tpu.memory_space<smem>>
    %c4 = arith.constant 4 : index
    %c0_10 = arith.constant 0 : index
    %21 = memref.load %arg2[%c4, %c0_10] : memref<6x16xf32, #tpu.memory_space<smem>>
    %c5 = arith.constant 5 : index
    %c0_11 = arith.constant 0 : index
    %22 = memref.load %arg2[%c5, %c0_11] : memref<6x16xf32, #tpu.memory_space<smem>>
    %23 = vector.broadcast %17 : f32 to vector<16x128xf32>
    %24 = arith.mulf %1, %23 : vector<16x128xf32>
    %25 = vector.broadcast %18 : f32 to vector<16x128xf32>
    %26 = arith.mulf %9, %25 : vector<16x128xf32>
    %27 = arith.addf %24, %26 : vector<16x128xf32>
    %28 = vector.broadcast %19 : f32 to vector<16x128xf32>
    %29 = arith.mulf %12, %28 : vector<16x128xf32>
    %30 = arith.addf %27, %29 : vector<16x128xf32>
    %31 = vector.broadcast %21 : f32 to vector<16x128xf32>
    %32 = arith.mulf %14, %31 : vector<16x128xf32>
    %33 = arith.addf %30, %32 : vector<16x128xf32>
    %34 = vector.broadcast %22 : f32 to vector<16x128xf32>
    %35 = arith.mulf %16, %34 : vector<16x128xf32>
    %36 = arith.addf %33, %35 : vector<16x128xf32>
    %37 = vector.broadcast %20 : f32 to vector<16x128xf32>
    %38 = arith.addf %36, %37 : vector<16x128xf32>
    %c0_12 = arith.constant 0 : index
    %c0_13 = arith.constant 0 : index
    %c0_14 = arith.constant 0 : index
    %c0_15 = arith.constant 0 : index
    %39 = vector.load %arg4[%c0_12, %c0_13, %c0_14, %c0_15] : memref<1x16x16x128xf32, #tpu.memory_space<vmem>>, vector<1x1x16x128xf32>
    %40 = vector.shape_cast %39 : vector<1x1x16x128xf32> to vector<16x128xf32>
    %41 = vector.shape_cast %38 : vector<16x128xf32> to vector<1x1x16x128xf32>
    tpu.vector_store %arg4[%c0_12, %c0_13, %c0_14, %c0_15], %41 {strides = array<i32>} : memref<1x16x16x128xf32, #tpu.memory_space<vmem>>, vector<1x1x16x128xf32>,
    %c0_16 = arith.constant 0 : index
    %c1_17 = arith.constant 1 : index
    %42 = memref.load %arg2[%c0_16, %c1_17] : memref<6x16xf32, #tpu.memory_space<smem>>
    %c1_18 = arith.constant 1 : index
    %c1_19 = arith.constant 1 : index
    %43 = memref.load %arg2[%c1_18, %c1_19] : memref<6x16xf32, #tpu.memory_space<smem>>
    %c2_20 = arith.constant 2 : index
    %c1_21 = arith.constant 1 : index
    %44 = memref.load %arg2[%c2_20, %c1_21] : memref<6x16xf32, #tpu.memory_space<smem>>
    %c3_22 = arith.constant 3 : index
    %c1_23 = arith.constant 1 : index
    %45 = memref.load %arg2[%c3_22, %c1_23] : memref<6x16xf32, #tpu.memory_space<smem>>
    %c4_24 = arith.constant 4 : index
    %c1_25 = arith.constant 1 : index
    %46 = memref.load %arg2[%c4_24, %c1_25] : memref<6x16xf32, #tpu.memory_space<smem>>
    %c5_26 = arith.constant 5 : index
    %c1_27 = arith.constant 1 : index
    %47 = memref.load %arg2[%c5_26, %c1_27] : memref<6x16xf32, #tpu.memory_space<smem>>
    %48 = vector.broadcast %42 : f32 to vector<16x128xf32>
    %49 = arith.mulf %1, %48 : vector<16x128xf32>
    %50 = vector.broadcast %43 : f32 to vector<16x128xf32>
    %51 = arith.mulf %9, %50 : vector<16x128xf32>
    %52 = arith.addf %49, %51 : vector<16x128xf32>
    %53 = vector.broadcast %44 : f32 to vector<16x128xf32>
    %54 = arith.mulf %12, %53 : vector<16x128xf32>
    %55 = arith.addf %52, %54 : vector<16x128xf32>
    %56 = vector.broadcast %46 : f32 to vector<16x128xf32>
    %57 = arith.mulf %14, %56 : vector<16x128xf32>
    %58 = arith.addf %55, %57 : vector<16x128xf32>
    %59 = vector.broadcast %47 : f32 to vector<16x128xf32>
    %60 = arith.mulf %16, %59 : vector<16x128xf32>
    %61 = arith.addf %58, %60 : vector<16x128xf32>
    %62 = vector.broadcast %45 : f32 to vector<16x128xf32>
    %63 = arith.addf %61, %62 : vector<16x128xf32>
    %c0_28 = arith.constant 0 : index
    %c1_29 = arith.constant 1 : index
    %c0_30 = arith.constant 0 : index
    %c0_31 = arith.constant 0 : index
    %64 = vector.load %arg4[%c0_28, %c1_29, %c0_30, %c0_31] : memref<1x16x16x128xf32, #tpu.memory_space<vmem>>, vector<1x1x16x128xf32>
    %65 = vector.shape_cast %64 : vector<1x1x16x128xf32> to vector<16x128xf32>
    %66 = vector.shape_cast %63 : vector<16x128xf32> to vector<1x1x16x128xf32>
    tpu.vector_store %arg4[%c0_28, %c1_29, %c0_30, %c0_31], %66 {strides = array<i32>} : memref<1x16x16x128xf32, #tpu.memory_space<vmem>>, vector<1x1x16x128xf32>,
    %c0_32 = arith.constant 0 : index
    %c2_33 = arith.constant 2 : index
    %67 = memref.load %arg2[%c0_32, %c2_33] : memref<6x16xf32, #tpu.memory_space<smem>>
    %c1_34 = arith.constant 1 : index
    %c2_35 = arith.constant 2 : index
    %68 = memref.load %arg2[%c1_34, %c2_35] : memref<6x16xf32, #tpu.memory_space<smem>>
    %c2_36 = arith.constant 2 : index
    %c2_37 = arith.constant 2 : index
    %69 = memref.load %arg2[%c2_36, %c2_37] : memref<6x16xf32, #tpu.memory_space<smem>>
    %c3_38 = arith.constant 3 : index
    %c2_39 = arith.constant 2 : index
    %70 = memref.load %arg2[%c3_38, %c2_39] : memref<6x16xf32, #tpu.memory_space<smem>>
    %c4_40 = arith.constant 4 : index
    %c2_41 = arith.constant 2 : index
    %71 = memref.load %arg2[%c4_40, %c2_41] : memref<6x16xf32, #tpu.memory_space<smem>>
    %c5_42 = arith.constant 5 : index
    %c2_43 = arith.constant 2 : index
    %72 = memref.load %arg2[%c5_42, %c2_43] : memref<6x16xf32, #tpu.memory_space<smem>>
    %73 = vector.broadcast %67 : f32 to vector<16x128xf32>
    %74 = arith.mulf %1, %73 : vector<16x128xf32>
    %75 = vector.broadcast %68 : f32 to vector<16x128xf32>
    %76 = arith.mulf %9, %75 : vector<16x128xf32>
    %77 = arith.addf %74, %76 : vector<16x128xf32>
    %78 = vector.broadcast %69 : f32 to vector<16x128xf32>
    %79 = arith.mulf %12, %78 : vector<16x128xf32>
    %80 = arith.addf %77, %79 : vector<16x128xf32>
    %81 = vector.broadcast %71 : f32 to vector<16x128xf32>
    %82 = arith.mulf %14, %81 : vector<16x128xf32>
    %83 = arith.addf %80, %82 : vector<16x128xf32>
    %84 = vector.broadcast %72 : f32 to vector<16x128xf32>
    %85 = arith.mulf %16, %84 : vector<16x128xf32>
    %86 = arith.addf %83, %85 : vector<16x128xf32>
    %87 = vector.broadcast %70 : f32 to vector<16x128xf32>
    %88 = arith.addf %86, %87 : vector<16x128xf32>
    %c0_44 = arith.constant 0 : index
    %c2_45 = arith.constant 2 : index
    %c0_46 = arith.constant 0 : index
    %c0_47 = arith.constant 0 : index
    %89 = vector.load %arg4[%c0_44, %c2_45, %c0_46, %c0_47] : memref<1x16x16x128xf32, #tpu.memory_space<vmem>>, vector<1x1x16x128xf32>
    %90 = vector.shape_cast %89 : vector<1x1x16x128xf32> to vector<16x128xf32>
    %91 = vector.shape_cast %88 : vector<16x128xf32> to vector<1x1x16x128xf32>
    tpu.vector_store %arg4[%c0_44, %c2_45, %c0_46, %c0_47], %91 {strides = array<i32>} : memref<1x16x16x128xf32, #tpu.memory_space<vmem>>, vector<1x1x16x128xf32>,
    %c0_48 = arith.constant 0 : index
    %c3_49 = arith.constant 3 : index
    %92 = memref.load %arg2[%c0_48, %c3_49] : memref<6x16xf32, #tpu.memory_space<smem>>
    %c1_50 = arith.constant 1 : index
    %c3_51 = arith.constant 3 : index
    %93 = memref.load %arg2[%c1_50, %c3_51] : memref<6x16xf32, #tpu.memory_space<smem>>
    %c2_52 = arith.constant 2 : index
    %c3_53 = arith.constant 3 : index
    %94 = memref.load %arg2[%c2_52, %c3_53] : memref<6x16xf32, #tpu.memory_space<smem>>
    %c3_54 = arith.constant 3 : index
    %c3_55 = arith.constant 3 : index
    %95 = memref.load %arg2[%c3_54, %c3_55] : memref<6x16xf32, #tpu.memory_space<smem>>
    %c4_56 = arith.constant 4 : index
    %c3_57 = arith.constant 3 : index
    %96 = memref.load %arg2[%c4_56, %c3_57] : memref<6x16xf32, #tpu.memory_space<smem>>
    %c5_58 = arith.constant 5 : index
    %c3_59 = arith.constant 3 : index
    %97 = memref.load %arg2[%c5_58, %c3_59] : memref<6x16xf32, #tpu.memory_space<smem>>
    %98 = vector.broadcast %92 : f32 to vector<16x128xf32>
    %99 = arith.mulf %1, %98 : vector<16x128xf32>
    %100 = vector.broadcast %93 : f32 to vector<16x128xf32>
    %101 = arith.mulf %9, %100 : vector<16x128xf32>
    %102 = arith.addf %99, %101 : vector<16x128xf32>
    %103 = vector.broadcast %94 : f32 to vector<16x128xf32>
    %104 = arith.mulf %12, %103 : vector<16x128xf32>
    %105 = arith.addf %102, %104 : vector<16x128xf32>
    %106 = vector.broadcast %96 : f32 to vector<16x128xf32>
    %107 = arith.mulf %14, %106 : vector<16x128xf32>
    %108 = arith.addf %105, %107 : vector<16x128xf32>
    %109 = vector.broadcast %97 : f32 to vector<16x128xf32>
    %110 = arith.mulf %16, %109 : vector<16x128xf32>
    %111 = arith.addf %108, %110 : vector<16x128xf32>
    %112 = vector.broadcast %95 : f32 to vector<16x128xf32>
    %113 = arith.addf %111, %112 : vector<16x128xf32>
    %c0_60 = arith.constant 0 : index
    %c3_61 = arith.constant 3 : index
    %c0_62 = arith.constant 0 : index
    %c0_63 = arith.constant 0 : index
    %114 = vector.load %arg4[%c0_60, %c3_61, %c0_62, %c0_63] : memref<1x16x16x128xf32, #tpu.memory_space<vmem>>, vector<1x1x16x128xf32>
    %115 = vector.shape_cast %114 : vector<1x1x16x128xf32> to vector<16x128xf32>
    %116 = vector.shape_cast %113 : vector<16x128xf32> to vector<1x1x16x128xf32>
    tpu.vector_store %arg4[%c0_60, %c3_61, %c0_62, %c0_63], %116 {strides = array<i32>} : memref<1x16x16x128xf32, #tpu.memory_space<vmem>>, vector<1x1x16x128xf32>,
    %c0_64 = arith.constant 0 : index
    %c4_65 = arith.constant 4 : index
    %117 = memref.load %arg2[%c0_64, %c4_65] : memref<6x16xf32, #tpu.memory_space<smem>>
    %c1_66 = arith.constant 1 : index
    %c4_67 = arith.constant 4 : index
    %118 = memref.load %arg2[%c1_66, %c4_67] : memref<6x16xf32, #tpu.memory_space<smem>>
    %c2_68 = arith.constant 2 : index
    %c4_69 = arith.constant 4 : index
    %119 = memref.load %arg2[%c2_68, %c4_69] : memref<6x16xf32, #tpu.memory_space<smem>>
    %c3_70 = arith.constant 3 : index
    %c4_71 = arith.constant 4 : index
    %120 = memref.load %arg2[%c3_70, %c4_71] : memref<6x16xf32, #tpu.memory_space<smem>>
    %c4_72 = arith.constant 4 : index
    %c4_73 = arith.constant 4 : index
    %121 = memref.load %arg2[%c4_72, %c4_73] : memref<6x16xf32, #tpu.memory_space<smem>>
    %c5_74 = arith.constant 5 : index
    %c4_75 = arith.constant 4 : index
    %122 = memref.load %arg2[%c5_74, %c4_75] : memref<6x16xf32, #tpu.memory_space<smem>>
    %123 = vector.broadcast %117 : f32 to vector<16x128xf32>
    %124 = arith.mulf %1, %123 : vector<16x128xf32>
    %125 = vector.broadcast %118 : f32 to vector<16x128xf32>
    %126 = arith.mulf %9, %125 : vector<16x128xf32>
    %127 = arith.addf %124, %126 : vector<16x128xf32>
    %128 = vector.broadcast %119 : f32 to vector<16x128xf32>
    %129 = arith.mulf %12, %128 : vector<16x128xf32>
    %130 = arith.addf %127, %129 : vector<16x128xf32>
    %131 = vector.broadcast %121 : f32 to vector<16x128xf32>
    %132 = arith.mulf %14, %131 : vector<16x128xf32>
    %133 = arith.addf %130, %132 : vector<16x128xf32>
    %134 = vector.broadcast %122 : f32 to vector<16x128xf32>
    %135 = arith.mulf %16, %134 : vector<16x128xf32>
    %136 = arith.addf %133, %135 : vector<16x128xf32>
    %137 = vector.broadcast %120 : f32 to vector<16x128xf32>
    %138 = arith.addf %136, %137 : vector<16x128xf32>
    %c0_76 = arith.constant 0 : index
    %c4_77 = arith.constant 4 : index
    %c0_78 = arith.constant 0 : index
    %c0_79 = arith.constant 0 : index
    %139 = vector.load %arg4[%c0_76, %c4_77, %c0_78, %c0_79] : memref<1x16x16x128xf32, #tpu.memory_space<vmem>>, vector<1x1x16x128xf32>
    %140 = vector.shape_cast %139 : vector<1x1x16x128xf32> to vector<16x128xf32>
    %141 = vector.shape_cast %138 : vector<16x128xf32> to vector<1x1x16x128xf32>
    tpu.vector_store %arg4[%c0_76, %c4_77, %c0_78, %c0_79], %141 {strides = array<i32>} : memref<1x16x16x128xf32, #tpu.memory_space<vmem>>, vector<1x1x16x128xf32>,
    %c0_80 = arith.constant 0 : index
    %c5_81 = arith.constant 5 : index
    %142 = memref.load %arg2[%c0_80, %c5_81] : memref<6x16xf32, #tpu.memory_space<smem>>
    %c1_82 = arith.constant 1 : index
    %c5_83 = arith.constant 5 : index
    %143 = memref.load %arg2[%c1_82, %c5_83] : memref<6x16xf32, #tpu.memory_space<smem>>
    %c2_84 = arith.constant 2 : index
    %c5_85 = arith.constant 5 : index
    %144 = memref.load %arg2[%c2_84, %c5_85] : memref<6x16xf32, #tpu.memory_space<smem>>
    %c3_86 = arith.constant 3 : index
    %c5_87 = arith.constant 5 : index
    %145 = memref.load %arg2[%c3_86, %c5_87] : memref<6x16xf32, #tpu.memory_space<smem>>
    %c4_88 = arith.constant 4 : index
    %c5_89 = arith.constant 5 : index
    %146 = memref.load %arg2[%c4_88, %c5_89] : memref<6x16xf32, #tpu.memory_space<smem>>
    %c5_90 = arith.constant 5 : index
    %c5_91 = arith.constant 5 : index
    %147 = memref.load %arg2[%c5_90, %c5_91] : memref<6x16xf32, #tpu.memory_space<smem>>
    %148 = vector.broadcast %142 : f32 to vector<16x128xf32>
    %149 = arith.mulf %1, %148 : vector<16x128xf32>
    %150 = vector.broadcast %143 : f32 to vector<16x128xf32>
    %151 = arith.mulf %9, %150 : vector<16x128xf32>
    %152 = arith.addf %149, %151 : vector<16x128xf32>
    %153 = vector.broadcast %144 : f32 to vector<16x128xf32>
    %154 = arith.mulf %12, %153 : vector<16x128xf32>
    %155 = arith.addf %152, %154 : vector<16x128xf32>
    %156 = vector.broadcast %146 : f32 to vector<16x128xf32>
    %157 = arith.mulf %14, %156 : vector<16x128xf32>
    %158 = arith.addf %155, %157 : vector<16x128xf32>
    %159 = vector.broadcast %147 : f32 to vector<16x128xf32>
    %160 = arith.mulf %16, %159 : vector<16x128xf32>
    %161 = arith.addf %158, %160 : vector<16x128xf32>
    %162 = vector.broadcast %145 : f32 to vector<16x128xf32>
    %163 = arith.addf %161, %162 : vector<16x128xf32>
    %c0_92 = arith.constant 0 : index
    %c5_93 = arith.constant 5 : index
    %c0_94 = arith.constant 0 : index
    %c0_95 = arith.constant 0 : index
    %164 = vector.load %arg4[%c0_92, %c5_93, %c0_94, %c0_95] : memref<1x16x16x128xf32, #tpu.memory_space<vmem>>, vector<1x1x16x128xf32>
    %165 = vector.shape_cast %164 : vector<1x1x16x128xf32> to vector<16x128xf32>
    %166 = vector.shape_cast %163 : vector<16x128xf32> to vector<1x1x16x128xf32>
    tpu.vector_store %arg4[%c0_92, %c5_93, %c0_94, %c0_95], %166 {strides = array<i32>} : memref<1x16x16x128xf32, #tpu.memory_space<vmem>>, vector<1x1x16x128xf32>,
    %c0_96 = arith.constant 0 : index
    %c6 = arith.constant 6 : index
    %167 = memref.load %arg2[%c0_96, %c6] : memref<6x16xf32, #tpu.memory_space<smem>>
    %c1_97 = arith.constant 1 : index
    %c6_98 = arith.constant 6 : index
    %168 = memref.load %arg2[%c1_97, %c6_98] : memref<6x16xf32, #tpu.memory_space<smem>>
    %c2_99 = arith.constant 2 : index
    %c6_100 = arith.constant 6 : index
    %169 = memref.load %arg2[%c2_99, %c6_100] : memref<6x16xf32, #tpu.memory_space<smem>>
    %c3_101 = arith.constant 3 : index
    %c6_102 = arith.constant 6 : index
    %170 = memref.load %arg2[%c3_101, %c6_102] : memref<6x16xf32, #tpu.memory_space<smem>>
    %c4_103 = arith.constant 4 : index
    %c6_104 = arith.constant 6 : index
    %171 = memref.load %arg2[%c4_103, %c6_104] : memref<6x16xf32, #tpu.memory_space<smem>>
    %c5_105 = arith.constant 5 : index
    %c6_106 = arith.constant 6 : index
    %172 = memref.load %arg2[%c5_105, %c6_106] : memref<6x16xf32, #tpu.memory_space<smem>>
    %173 = vector.broadcast %167 : f32 to vector<16x128xf32>
    %174 = arith.mulf %1, %173 : vector<16x128xf32>
    %175 = vector.broadcast %168 : f32 to vector<16x128xf32>
    %176 = arith.mulf %9, %175 : vector<16x128xf32>
    %177 = arith.addf %174, %176 : vector<16x128xf32>
    %178 = vector.broadcast %169 : f32 to vector<16x128xf32>
    %179 = arith.mulf %12, %178 : vector<16x128xf32>
    %180 = arith.addf %177, %179 : vector<16x128xf32>
    %181 = vector.broadcast %171 : f32 to vector<16x128xf32>
    %182 = arith.mulf %14, %181 : vector<16x128xf32>
    %183 = arith.addf %180, %182 : vector<16x128xf32>
    %184 = vector.broadcast %172 : f32 to vector<16x128xf32>
    %185 = arith.mulf %16, %184 : vector<16x128xf32>
    %186 = arith.addf %183, %185 : vector<16x128xf32>
    %187 = vector.broadcast %170 : f32 to vector<16x128xf32>
    %188 = arith.addf %186, %187 : vector<16x128xf32>
    %c0_107 = arith.constant 0 : index
    %c6_108 = arith.constant 6 : index
    %c0_109 = arith.constant 0 : index
    %c0_110 = arith.constant 0 : index
    %189 = vector.load %arg4[%c0_107, %c6_108, %c0_109, %c0_110] : memref<1x16x16x128xf32, #tpu.memory_space<vmem>>, vector<1x1x16x128xf32>
    %190 = vector.shape_cast %189 : vector<1x1x16x128xf32> to vector<16x128xf32>
    %191 = vector.shape_cast %188 : vector<16x128xf32> to vector<1x1x16x128xf32>
    tpu.vector_store %arg4[%c0_107, %c6_108, %c0_109, %c0_110], %191 {strides = array<i32>} : memref<1x16x16x128xf32, #tpu.memory_space<vmem>>, vector<1x1x16x128xf32>,
    %c0_111 = arith.constant 0 : index
    %c7 = arith.constant 7 : index
    %192 = memref.load %arg2[%c0_111, %c7] : memref<6x16xf32, #tpu.memory_space<smem>>
    %c1_112 = arith.constant 1 : index
    %c7_113 = arith.constant 7 : index
    %193 = memref.load %arg2[%c1_112, %c7_113] : memref<6x16xf32, #tpu.memory_space<smem>>
    %c2_114 = arith.constant 2 : index
    %c7_115 = arith.constant 7 : index
    %194 = memref.load %arg2[%c2_114, %c7_115] : memref<6x16xf32, #tpu.memory_space<smem>>
    %c3_116 = arith.constant 3 : index
    %c7_117 = arith.constant 7 : index
    %195 = memref.load %arg2[%c3_116, %c7_117] : memref<6x16xf32, #tpu.memory_space<smem>>
    %c4_118 = arith.constant 4 : index
    %c7_119 = arith.constant 7 : index
    %196 = memref.load %arg2[%c4_118, %c7_119] : memref<6x16xf32, #tpu.memory_space<smem>>
    %c5_120 = arith.constant 5 : index
    %c7_121 = arith.constant 7 : index
    %197 = memref.load %arg2[%c5_120, %c7_121] : memref<6x16xf32, #tpu.memory_space<smem>>
    %198 = vector.broadcast %192 : f32 to vector<16x128xf32>
    %199 = arith.mulf %1, %198 : vector<16x128xf32>
    %200 = vector.broadcast %193 : f32 to vector<16x128xf32>
    %201 = arith.mulf %9, %200 : vector<16x128xf32>
    %202 = arith.addf %199, %201 : vector<16x128xf32>
    %203 = vector.broadcast %194 : f32 to vector<16x128xf32>
    %204 = arith.mulf %12, %203 : vector<16x128xf32>
    %205 = arith.addf %202, %204 : vector<16x128xf32>
    %206 = vector.broadcast %196 : f32 to vector<16x128xf32>
    %207 = arith.mulf %14, %206 : vector<16x128xf32>
    %208 = arith.addf %205, %207 : vector<16x128xf32>
    %209 = vector.broadcast %197 : f32 to vector<16x128xf32>
    %210 = arith.mulf %16, %209 : vector<16x128xf32>
    %211 = arith.addf %208, %210 : vector<16x128xf32>
    %212 = vector.broadcast %195 : f32 to vector<16x128xf32>
    %213 = arith.addf %211, %212 : vector<16x128xf32>
    %c0_122 = arith.constant 0 : index
    %c7_123 = arith.constant 7 : index
    %c0_124 = arith.constant 0 : index
    %c0_125 = arith.constant 0 : index
    %214 = vector.load %arg4[%c0_122, %c7_123, %c0_124, %c0_125] : memref<1x16x16x128xf32, #tpu.memory_space<vmem>>, vector<1x1x16x128xf32>
    %215 = vector.shape_cast %214 : vector<1x1x16x128xf32> to vector<16x128xf32>
    %216 = vector.shape_cast %213 : vector<16x128xf32> to vector<1x1x16x128xf32>
    tpu.vector_store %arg4[%c0_122, %c7_123, %c0_124, %c0_125], %216 {strides = array<i32>} : memref<1x16x16x128xf32, #tpu.memory_space<vmem>>, vector<1x1x16x128xf32>,
    %c0_126 = arith.constant 0 : index
    %c8 = arith.constant 8 : index
    %217 = memref.load %arg2[%c0_126, %c8] : memref<6x16xf32, #tpu.memory_space<smem>>
    %c1_127 = arith.constant 1 : index
    %c8_128 = arith.constant 8 : index
    %218 = memref.load %arg2[%c1_127, %c8_128] : memref<6x16xf32, #tpu.memory_space<smem>>
    %c2_129 = arith.constant 2 : index
    %c8_130 = arith.constant 8 : index
    %219 = memref.load %arg2[%c2_129, %c8_130] : memref<6x16xf32, #tpu.memory_space<smem>>
    %c3_131 = arith.constant 3 : index
    %c8_132 = arith.constant 8 : index
    %220 = memref.load %arg2[%c3_131, %c8_132] : memref<6x16xf32, #tpu.memory_space<smem>>
    %c4_133 = arith.constant 4 : index
    %c8_134 = arith.constant 8 : index
    %221 = memref.load %arg2[%c4_133, %c8_134] : memref<6x16xf32, #tpu.memory_space<smem>>
    %c5_135 = arith.constant 5 : index
    %c8_136 = arith.constant 8 : index
    %222 = memref.load %arg2[%c5_135, %c8_136] : memref<6x16xf32, #tpu.memory_space<smem>>
    %223 = vector.broadcast %217 : f32 to vector<16x128xf32>
    %224 = arith.mulf %1, %223 : vector<16x128xf32>
    %225 = vector.broadcast %218 : f32 to vector<16x128xf32>
    %226 = arith.mulf %9, %225 : vector<16x128xf32>
    %227 = arith.addf %224, %226 : vector<16x128xf32>
    %228 = vector.broadcast %219 : f32 to vector<16x128xf32>
    %229 = arith.mulf %12, %228 : vector<16x128xf32>
    %230 = arith.addf %227, %229 : vector<16x128xf32>
    %231 = vector.broadcast %221 : f32 to vector<16x128xf32>
    %232 = arith.mulf %14, %231 : vector<16x128xf32>
    %233 = arith.addf %230, %232 : vector<16x128xf32>
    %234 = vector.broadcast %222 : f32 to vector<16x128xf32>
    %235 = arith.mulf %16, %234 : vector<16x128xf32>
    %236 = arith.addf %233, %235 : vector<16x128xf32>
    %237 = vector.broadcast %220 : f32 to vector<16x128xf32>
    %238 = arith.addf %236, %237 : vector<16x128xf32>
    %c0_137 = arith.constant 0 : index
    %c8_138 = arith.constant 8 : index
    %c0_139 = arith.constant 0 : index
    %c0_140 = arith.constant 0 : index
    %239 = vector.load %arg4[%c0_137, %c8_138, %c0_139, %c0_140] : memref<1x16x16x128xf32, #tpu.memory_space<vmem>>, vector<1x1x16x128xf32>
    %240 = vector.shape_cast %239 : vector<1x1x16x128xf32> to vector<16x128xf32>
    %241 = vector.shape_cast %238 : vector<16x128xf32> to vector<1x1x16x128xf32>
    tpu.vector_store %arg4[%c0_137, %c8_138, %c0_139, %c0_140], %241 {strides = array<i32>} : memref<1x16x16x128xf32, #tpu.memory_space<vmem>>, vector<1x1x16x128xf32>,
    %c0_141 = arith.constant 0 : index
    %c9 = arith.constant 9 : index
    %242 = memref.load %arg2[%c0_141, %c9] : memref<6x16xf32, #tpu.memory_space<smem>>
    %c1_142 = arith.constant 1 : index
    %c9_143 = arith.constant 9 : index
    %243 = memref.load %arg2[%c1_142, %c9_143] : memref<6x16xf32, #tpu.memory_space<smem>>
    %c2_144 = arith.constant 2 : index
    %c9_145 = arith.constant 9 : index
    %244 = memref.load %arg2[%c2_144, %c9_145] : memref<6x16xf32, #tpu.memory_space<smem>>
    %c3_146 = arith.constant 3 : index
    %c9_147 = arith.constant 9 : index
    %245 = memref.load %arg2[%c3_146, %c9_147] : memref<6x16xf32, #tpu.memory_space<smem>>
    %c4_148 = arith.constant 4 : index
    %c9_149 = arith.constant 9 : index
    %246 = memref.load %arg2[%c4_148, %c9_149] : memref<6x16xf32, #tpu.memory_space<smem>>
    %c5_150 = arith.constant 5 : index
    %c9_151 = arith.constant 9 : index
    %247 = memref.load %arg2[%c5_150, %c9_151] : memref<6x16xf32, #tpu.memory_space<smem>>
    %248 = vector.broadcast %242 : f32 to vector<16x128xf32>
    %249 = arith.mulf %1, %248 : vector<16x128xf32>
    %250 = vector.broadcast %243 : f32 to vector<16x128xf32>
    %251 = arith.mulf %9, %250 : vector<16x128xf32>
    %252 = arith.addf %249, %251 : vector<16x128xf32>
    %253 = vector.broadcast %244 : f32 to vector<16x128xf32>
    %254 = arith.mulf %12, %253 : vector<16x128xf32>
    %255 = arith.addf %252, %254 : vector<16x128xf32>
    %256 = vector.broadcast %246 : f32 to vector<16x128xf32>
    %257 = arith.mulf %14, %256 : vector<16x128xf32>
    %258 = arith.addf %255, %257 : vector<16x128xf32>
    %259 = vector.broadcast %247 : f32 to vector<16x128xf32>
    %260 = arith.mulf %16, %259 : vector<16x128xf32>
    %261 = arith.addf %258, %260 : vector<16x128xf32>
    %262 = vector.broadcast %245 : f32 to vector<16x128xf32>
    %263 = arith.addf %261, %262 : vector<16x128xf32>
    %c0_152 = arith.constant 0 : index
    %c9_153 = arith.constant 9 : index
    %c0_154 = arith.constant 0 : index
    %c0_155 = arith.constant 0 : index
    %264 = vector.load %arg4[%c0_152, %c9_153, %c0_154, %c0_155] : memref<1x16x16x128xf32, #tpu.memory_space<vmem>>, vector<1x1x16x128xf32>
    %265 = vector.shape_cast %264 : vector<1x1x16x128xf32> to vector<16x128xf32>
    %266 = vector.shape_cast %263 : vector<16x128xf32> to vector<1x1x16x128xf32>
    tpu.vector_store %arg4[%c0_152, %c9_153, %c0_154, %c0_155], %266 {strides = array<i32>} : memref<1x16x16x128xf32, #tpu.memory_space<vmem>>, vector<1x1x16x128xf32>,
    %c0_156 = arith.constant 0 : index
    %c10 = arith.constant 10 : index
    %267 = memref.load %arg2[%c0_156, %c10] : memref<6x16xf32, #tpu.memory_space<smem>>
    %c1_157 = arith.constant 1 : index
    %c10_158 = arith.constant 10 : index
    %268 = memref.load %arg2[%c1_157, %c10_158] : memref<6x16xf32, #tpu.memory_space<smem>>
    %c2_159 = arith.constant 2 : index
    %c10_160 = arith.constant 10 : index
    %269 = memref.load %arg2[%c2_159, %c10_160] : memref<6x16xf32, #tpu.memory_space<smem>>
    %c3_161 = arith.constant 3 : index
    %c10_162 = arith.constant 10 : index
    %270 = memref.load %arg2[%c3_161, %c10_162] : memref<6x16xf32, #tpu.memory_space<smem>>
    %c4_163 = arith.constant 4 : index
    %c10_164 = arith.constant 10 : index
    %271 = memref.load %arg2[%c4_163, %c10_164] : memref<6x16xf32, #tpu.memory_space<smem>>
    %c5_165 = arith.constant 5 : index
    %c10_166 = arith.constant 10 : index
    %272 = memref.load %arg2[%c5_165, %c10_166] : memref<6x16xf32, #tpu.memory_space<smem>>
    %273 = vector.broadcast %267 : f32 to vector<16x128xf32>
    %274 = arith.mulf %1, %273 : vector<16x128xf32>
    %275 = vector.broadcast %268 : f32 to vector<16x128xf32>
    %276 = arith.mulf %9, %275 : vector<16x128xf32>
    %277 = arith.addf %274, %276 : vector<16x128xf32>
    %278 = vector.broadcast %269 : f32 to vector<16x128xf32>
    %279 = arith.mulf %12, %278 : vector<16x128xf32>
    %280 = arith.addf %277, %279 : vector<16x128xf32>
    %281 = vector.broadcast %271 : f32 to vector<16x128xf32>
    %282 = arith.mulf %14, %281 : vector<16x128xf32>
    %283 = arith.addf %280, %282 : vector<16x128xf32>
    %284 = vector.broadcast %272 : f32 to vector<16x128xf32>
    %285 = arith.mulf %16, %284 : vector<16x128xf32>
    %286 = arith.addf %283, %285 : vector<16x128xf32>
    %287 = vector.broadcast %270 : f32 to vector<16x128xf32>
    %288 = arith.addf %286, %287 : vector<16x128xf32>
    %c0_167 = arith.constant 0 : index
    %c10_168 = arith.constant 10 : index
    %c0_169 = arith.constant 0 : index
    %c0_170 = arith.constant 0 : index
    %289 = vector.load %arg4[%c0_167, %c10_168, %c0_169, %c0_170] : memref<1x16x16x128xf32, #tpu.memory_space<vmem>>, vector<1x1x16x128xf32>
    %290 = vector.shape_cast %289 : vector<1x1x16x128xf32> to vector<16x128xf32>
    %291 = vector.shape_cast %288 : vector<16x128xf32> to vector<1x1x16x128xf32>
    tpu.vector_store %arg4[%c0_167, %c10_168, %c0_169, %c0_170], %291 {strides = array<i32>} : memref<1x16x16x128xf32, #tpu.memory_space<vmem>>, vector<1x1x16x128xf32>,
    %c0_171 = arith.constant 0 : index
    %c11 = arith.constant 11 : index
    %292 = memref.load %arg2[%c0_171, %c11] : memref<6x16xf32, #tpu.memory_space<smem>>
    %c1_172 = arith.constant 1 : index
    %c11_173 = arith.constant 11 : index
    %293 = memref.load %arg2[%c1_172, %c11_173] : memref<6x16xf32, #tpu.memory_space<smem>>
    %c2_174 = arith.constant 2 : index
    %c11_175 = arith.constant 11 : index
    %294 = memref.load %arg2[%c2_174, %c11_175] : memref<6x16xf32, #tpu.memory_space<smem>>
    %c3_176 = arith.constant 3 : index
    %c11_177 = arith.constant 11 : index
    %295 = memref.load %arg2[%c3_176, %c11_177] : memref<6x16xf32, #tpu.memory_space<smem>>
    %c4_178 = arith.constant 4 : index
    %c11_179 = arith.constant 11 : index
    %296 = memref.load %arg2[%c4_178, %c11_179] : memref<6x16xf32, #tpu.memory_space<smem>>
    %c5_180 = arith.constant 5 : index
    %c11_181 = arith.constant 11 : index
    %297 = memref.load %arg2[%c5_180, %c11_181] : memref<6x16xf32, #tpu.memory_space<smem>>
    %298 = vector.broadcast %292 : f32 to vector<16x128xf32>
    %299 = arith.mulf %1, %298 : vector<16x128xf32>
    %300 = vector.broadcast %293 : f32 to vector<16x128xf32>
    %301 = arith.mulf %9, %300 : vector<16x128xf32>
    %302 = arith.addf %299, %301 : vector<16x128xf32>
    %303 = vector.broadcast %294 : f32 to vector<16x128xf32>
    %304 = arith.mulf %12, %303 : vector<16x128xf32>
    %305 = arith.addf %302, %304 : vector<16x128xf32>
    %306 = vector.broadcast %296 : f32 to vector<16x128xf32>
    %307 = arith.mulf %14, %306 : vector<16x128xf32>
    %308 = arith.addf %305, %307 : vector<16x128xf32>
    %309 = vector.broadcast %297 : f32 to vector<16x128xf32>
    %310 = arith.mulf %16, %309 : vector<16x128xf32>
    %311 = arith.addf %308, %310 : vector<16x128xf32>
    %312 = vector.broadcast %295 : f32 to vector<16x128xf32>
    %313 = arith.addf %311, %312 : vector<16x128xf32>
    %c0_182 = arith.constant 0 : index
    %c11_183 = arith.constant 11 : index
    %c0_184 = arith.constant 0 : index
    %c0_185 = arith.constant 0 : index
    %314 = vector.load %arg4[%c0_182, %c11_183, %c0_184, %c0_185] : memref<1x16x16x128xf32, #tpu.memory_space<vmem>>, vector<1x1x16x128xf32>
    %315 = vector.shape_cast %314 : vector<1x1x16x128xf32> to vector<16x128xf32>
    %316 = vector.shape_cast %313 : vector<16x128xf32> to vector<1x1x16x128xf32>
    tpu.vector_store %arg4[%c0_182, %c11_183, %c0_184, %c0_185], %316 {strides = array<i32>} : memref<1x16x16x128xf32, #tpu.memory_space<vmem>>, vector<1x1x16x128xf32>,
    %c0_186 = arith.constant 0 : index
    %c12 = arith.constant 12 : index
    %317 = memref.load %arg2[%c0_186, %c12] : memref<6x16xf32, #tpu.memory_space<smem>>
    %c1_187 = arith.constant 1 : index
    %c12_188 = arith.constant 12 : index
    %318 = memref.load %arg2[%c1_187, %c12_188] : memref<6x16xf32, #tpu.memory_space<smem>>
    %c2_189 = arith.constant 2 : index
    %c12_190 = arith.constant 12 : index
    %319 = memref.load %arg2[%c2_189, %c12_190] : memref<6x16xf32, #tpu.memory_space<smem>>
    %c3_191 = arith.constant 3 : index
    %c12_192 = arith.constant 12 : index
    %320 = memref.load %arg2[%c3_191, %c12_192] : memref<6x16xf32, #tpu.memory_space<smem>>
    %c4_193 = arith.constant 4 : index
    %c12_194 = arith.constant 12 : index
    %321 = memref.load %arg2[%c4_193, %c12_194] : memref<6x16xf32, #tpu.memory_space<smem>>
    %c5_195 = arith.constant 5 : index
    %c12_196 = arith.constant 12 : index
    %322 = memref.load %arg2[%c5_195, %c12_196] : memref<6x16xf32, #tpu.memory_space<smem>>
    %323 = vector.broadcast %317 : f32 to vector<16x128xf32>
    %324 = arith.mulf %1, %323 : vector<16x128xf32>
    %325 = vector.broadcast %318 : f32 to vector<16x128xf32>
    %326 = arith.mulf %9, %325 : vector<16x128xf32>
    %327 = arith.addf %324, %326 : vector<16x128xf32>
    %328 = vector.broadcast %319 : f32 to vector<16x128xf32>
    %329 = arith.mulf %12, %328 : vector<16x128xf32>
    %330 = arith.addf %327, %329 : vector<16x128xf32>
    %331 = vector.broadcast %321 : f32 to vector<16x128xf32>
    %332 = arith.mulf %14, %331 : vector<16x128xf32>
    %333 = arith.addf %330, %332 : vector<16x128xf32>
    %334 = vector.broadcast %322 : f32 to vector<16x128xf32>
    %335 = arith.mulf %16, %334 : vector<16x128xf32>
    %336 = arith.addf %333, %335 : vector<16x128xf32>
    %337 = vector.broadcast %320 : f32 to vector<16x128xf32>
    %338 = arith.addf %336, %337 : vector<16x128xf32>
    %c0_197 = arith.constant 0 : index
    %c12_198 = arith.constant 12 : index
    %c0_199 = arith.constant 0 : index
    %c0_200 = arith.constant 0 : index
    %339 = vector.load %arg4[%c0_197, %c12_198, %c0_199, %c0_200] : memref<1x16x16x128xf32, #tpu.memory_space<vmem>>, vector<1x1x16x128xf32>
    %340 = vector.shape_cast %339 : vector<1x1x16x128xf32> to vector<16x128xf32>
    %341 = vector.shape_cast %338 : vector<16x128xf32> to vector<1x1x16x128xf32>
    tpu.vector_store %arg4[%c0_197, %c12_198, %c0_199, %c0_200], %341 {strides = array<i32>} : memref<1x16x16x128xf32, #tpu.memory_space<vmem>>, vector<1x1x16x128xf32>,
    %c0_201 = arith.constant 0 : index
    %c13 = arith.constant 13 : index
    %342 = memref.load %arg2[%c0_201, %c13] : memref<6x16xf32, #tpu.memory_space<smem>>
    %c1_202 = arith.constant 1 : index
    %c13_203 = arith.constant 13 : index
    %343 = memref.load %arg2[%c1_202, %c13_203] : memref<6x16xf32, #tpu.memory_space<smem>>
    %c2_204 = arith.constant 2 : index
    %c13_205 = arith.constant 13 : index
    %344 = memref.load %arg2[%c2_204, %c13_205] : memref<6x16xf32, #tpu.memory_space<smem>>
    %c3_206 = arith.constant 3 : index
    %c13_207 = arith.constant 13 : index
    %345 = memref.load %arg2[%c3_206, %c13_207] : memref<6x16xf32, #tpu.memory_space<smem>>
    %c4_208 = arith.constant 4 : index
    %c13_209 = arith.constant 13 : index
    %346 = memref.load %arg2[%c4_208, %c13_209] : memref<6x16xf32, #tpu.memory_space<smem>>
    %c5_210 = arith.constant 5 : index
    %c13_211 = arith.constant 13 : index
    %347 = memref.load %arg2[%c5_210, %c13_211] : memref<6x16xf32, #tpu.memory_space<smem>>
    %348 = vector.broadcast %342 : f32 to vector<16x128xf32>
    %349 = arith.mulf %1, %348 : vector<16x128xf32>
    %350 = vector.broadcast %343 : f32 to vector<16x128xf32>
    %351 = arith.mulf %9, %350 : vector<16x128xf32>
    %352 = arith.addf %349, %351 : vector<16x128xf32>
    %353 = vector.broadcast %344 : f32 to vector<16x128xf32>
    %354 = arith.mulf %12, %353 : vector<16x128xf32>
    %355 = arith.addf %352, %354 : vector<16x128xf32>
    %356 = vector.broadcast %346 : f32 to vector<16x128xf32>
    %357 = arith.mulf %14, %356 : vector<16x128xf32>
    %358 = arith.addf %355, %357 : vector<16x128xf32>
    %359 = vector.broadcast %347 : f32 to vector<16x128xf32>
    %360 = arith.mulf %16, %359 : vector<16x128xf32>
    %361 = arith.addf %358, %360 : vector<16x128xf32>
    %362 = vector.broadcast %345 : f32 to vector<16x128xf32>
    %363 = arith.addf %361, %362 : vector<16x128xf32>
    %c0_212 = arith.constant 0 : index
    %c13_213 = arith.constant 13 : index
    %c0_214 = arith.constant 0 : index
    %c0_215 = arith.constant 0 : index
    %364 = vector.load %arg4[%c0_212, %c13_213, %c0_214, %c0_215] : memref<1x16x16x128xf32, #tpu.memory_space<vmem>>, vector<1x1x16x128xf32>
    %365 = vector.shape_cast %364 : vector<1x1x16x128xf32> to vector<16x128xf32>
    %366 = vector.shape_cast %363 : vector<16x128xf32> to vector<1x1x16x128xf32>
    tpu.vector_store %arg4[%c0_212, %c13_213, %c0_214, %c0_215], %366 {strides = array<i32>} : memref<1x16x16x128xf32, #tpu.memory_space<vmem>>, vector<1x1x16x128xf32>,
    %c0_216 = arith.constant 0 : index
    %c14 = arith.constant 14 : index
    %367 = memref.load %arg2[%c0_216, %c14] : memref<6x16xf32, #tpu.memory_space<smem>>
    %c1_217 = arith.constant 1 : index
    %c14_218 = arith.constant 14 : index
    %368 = memref.load %arg2[%c1_217, %c14_218] : memref<6x16xf32, #tpu.memory_space<smem>>
    %c2_219 = arith.constant 2 : index
    %c14_220 = arith.constant 14 : index
    %369 = memref.load %arg2[%c2_219, %c14_220] : memref<6x16xf32, #tpu.memory_space<smem>>
    %c3_221 = arith.constant 3 : index
    %c14_222 = arith.constant 14 : index
    %370 = memref.load %arg2[%c3_221, %c14_222] : memref<6x16xf32, #tpu.memory_space<smem>>
    %c4_223 = arith.constant 4 : index
    %c14_224 = arith.constant 14 : index
    %371 = memref.load %arg2[%c4_223, %c14_224] : memref<6x16xf32, #tpu.memory_space<smem>>
    %c5_225 = arith.constant 5 : index
    %c14_226 = arith.constant 14 : index
    %372 = memref.load %arg2[%c5_225, %c14_226] : memref<6x16xf32, #tpu.memory_space<smem>>
    %373 = vector.broadcast %367 : f32 to vector<16x128xf32>
    %374 = arith.mulf %1, %373 : vector<16x128xf32>
    %375 = vector.broadcast %368 : f32 to vector<16x128xf32>
    %376 = arith.mulf %9, %375 : vector<16x128xf32>
    %377 = arith.addf %374, %376 : vector<16x128xf32>
    %378 = vector.broadcast %369 : f32 to vector<16x128xf32>
    %379 = arith.mulf %12, %378 : vector<16x128xf32>
    %380 = arith.addf %377, %379 : vector<16x128xf32>
    %381 = vector.broadcast %371 : f32 to vector<16x128xf32>
    %382 = arith.mulf %14, %381 : vector<16x128xf32>
    %383 = arith.addf %380, %382 : vector<16x128xf32>
    %384 = vector.broadcast %372 : f32 to vector<16x128xf32>
    %385 = arith.mulf %16, %384 : vector<16x128xf32>
    %386 = arith.addf %383, %385 : vector<16x128xf32>
    %387 = vector.broadcast %370 : f32 to vector<16x128xf32>
    %388 = arith.addf %386, %387 : vector<16x128xf32>
    %c0_227 = arith.constant 0 : index
    %c14_228 = arith.constant 14 : index
    %c0_229 = arith.constant 0 : index
    %c0_230 = arith.constant 0 : index
    %389 = vector.load %arg4[%c0_227, %c14_228, %c0_229, %c0_230] : memref<1x16x16x128xf32, #tpu.memory_space<vmem>>, vector<1x1x16x128xf32>
    %390 = vector.shape_cast %389 : vector<1x1x16x128xf32> to vector<16x128xf32>
    %391 = vector.shape_cast %388 : vector<16x128xf32> to vector<1x1x16x128xf32>
    tpu.vector_store %arg4[%c0_227, %c14_228, %c0_229, %c0_230], %391 {strides = array<i32>} : memref<1x16x16x128xf32, #tpu.memory_space<vmem>>, vector<1x1x16x128xf32>,
    %c0_231 = arith.constant 0 : index
    %c15 = arith.constant 15 : index
    %392 = memref.load %arg2[%c0_231, %c15] : memref<6x16xf32, #tpu.memory_space<smem>>
    %c1_232 = arith.constant 1 : index
    %c15_233 = arith.constant 15 : index
    %393 = memref.load %arg2[%c1_232, %c15_233] : memref<6x16xf32, #tpu.memory_space<smem>>
    %c2_234 = arith.constant 2 : index
    %c15_235 = arith.constant 15 : index
    %394 = memref.load %arg2[%c2_234, %c15_235] : memref<6x16xf32, #tpu.memory_space<smem>>
    %c3_236 = arith.constant 3 : index
    %c15_237 = arith.constant 15 : index
    %395 = memref.load %arg2[%c3_236, %c15_237] : memref<6x16xf32, #tpu.memory_space<smem>>
    %c4_238 = arith.constant 4 : index
    %c15_239 = arith.constant 15 : index
    %396 = memref.load %arg2[%c4_238, %c15_239] : memref<6x16xf32, #tpu.memory_space<smem>>
    %c5_240 = arith.constant 5 : index
    %c15_241 = arith.constant 15 : index
    %397 = memref.load %arg2[%c5_240, %c15_241] : memref<6x16xf32, #tpu.memory_space<smem>>
    %398 = vector.broadcast %392 : f32 to vector<16x128xf32>
    %399 = arith.mulf %1, %398 : vector<16x128xf32>
    %400 = vector.broadcast %393 : f32 to vector<16x128xf32>
    %401 = arith.mulf %9, %400 : vector<16x128xf32>
    %402 = arith.addf %399, %401 : vector<16x128xf32>
    %403 = vector.broadcast %394 : f32 to vector<16x128xf32>
    %404 = arith.mulf %12, %403 : vector<16x128xf32>
    %405 = arith.addf %402, %404 : vector<16x128xf32>
    %406 = vector.broadcast %396 : f32 to vector<16x128xf32>
    %407 = arith.mulf %14, %406 : vector<16x128xf32>
    %408 = arith.addf %405, %407 : vector<16x128xf32>
    %409 = vector.broadcast %397 : f32 to vector<16x128xf32>
    %410 = arith.mulf %16, %409 : vector<16x128xf32>
    %411 = arith.addf %408, %410 : vector<16x128xf32>
    %412 = vector.broadcast %395 : f32 to vector<16x128xf32>
    %413 = arith.addf %411, %412 : vector<16x128xf32>
    %c0_242 = arith.constant 0 : index
    %c15_243 = arith.constant 15 : index
    %c0_244 = arith.constant 0 : index
    %c0_245 = arith.constant 0 : index
    %414 = vector.load %arg4[%c0_242, %c15_243, %c0_244, %c0_245] : memref<1x16x16x128xf32, #tpu.memory_space<vmem>>, vector<1x1x16x128xf32>
    %415 = vector.shape_cast %414 : vector<1x1x16x128xf32> to vector<16x128xf32>
    %416 = vector.shape_cast %413 : vector<16x128xf32> to vector<1x1x16x128xf32>
    tpu.vector_store %arg4[%c0_242, %c15_243, %c0_244, %c0_245], %416 {strides = array<i32>} : memref<1x16x16x128xf32, #tpu.memory_space<vmem>>, vector<1x1x16x128xf32>,
    return
  }
  func.func @transform_0(%arg0: i32, %arg1: i32) -> (i32, i32) {
    %c0_i32 = arith.constant 0 : i32
    %c0_i32_0 = arith.constant 0 : i32
    %c0_i32_1 = arith.constant 0 : i32
    return %c0_i32, %c0_i32_0 : i32, i32
  }
  func.func @transform_1(%arg0: i32, %arg1: i32) -> (i32, i32, i32) {
    %c0_i32 = arith.constant 0 : i32
    %c0_i32_0 = arith.constant 0 : i32
    return %arg0, %arg1, %c0_i32 : i32, i32, i32
  }
  func.func @transform_2(%arg0: i32, %arg1: i32) -> (i32, i32, i32, i32) {
    %c0_i32 = arith.constant 0 : i32
    %c0_i32_0 = arith.constant 0 : i32
    %c0_i32_1 = arith.constant 0 : i32
    return %arg0, %c0_i32, %arg1, %c0_i32_0 : i32, i32, i32, i32
  }
}

</mosaic_0001>

<llo_original>
// kernel: tpu_custom_call.1
$region0: #{tpu_custom_call.1}
  #allocation0 [shape = 'u32[]', space=smem, size = 0x4, offset = 0x4, fixed_abs, tag = 'smem constant byte address 0x4 - core index']
  #allocation1 [shape = 'u32[72,128]{1,0:T(1,128)}', space=vmem, size = 0x9000, scoped, tag = 'internal scratch']
  %s0 = inlined_call_operand.hbm [shape: f32[6,16], index: 0, kind: input, shape index: {}]
  %s1 = inlined_call_operand.hbm [shape: f32[2,16,128], index: 1, kind: input, shape index: {}]
  %s2 = inlined_call_operand.hbm [shape: f32[2,16,16,128], index: 2, kind: output, shape index: {}]
  %s3 = sld [smem:[#allocation0]]
  $region49: #{tpu_custom_call.1} parent=0
    _
  %s5 = ssub.s32 1, %s3
  %s6 = scalar_select 0, %s5, %s3
  $region1: #{tpu_custom_call.1} parent=0
    #allocation2 [shape = 'u8[4096]{0}', space=smem, size = 0x1000, scoped, tag = 'input window, operand 0, single buffered']
    #allocation3 [shape = 's32[2]{0}', space=sflag, size = 0x8, scoped, tag = 'scoped memory for tpu_custom_call.1']
    #allocation4 [shape = 's32[2]{0}', space=sflag, size = 0x8, scoped, tag = 'scoped memory for tpu_custom_call.1']
    #allocation5 [shape = 's32[2]{0}', space=sflag, size = 0x8, scoped, tag = 'scoped memory for tpu_custom_call.1']
    #allocation6 [shape = 'u8[16384]{0}', space=vmem, size = 0x4000, scoped, tag = 'input window, operand 1']
    #allocation7 [shape = 'u8[262144]{0}', space=vmem, size = 0x40000, scoped, tag = 'output window, operand 0']
    %7 = vsyncpa [#allocation5], 0
    %8 = vsyncpa [#allocation3], 0
    %s9 = scalar_lea.sflag [#allocation3], 1
    %10 = vsyncpa %s9, 0
    %11 = vsyncpa [#allocation4], 0
    %s12 = scalar_lea.sflag [#allocation4], 1
    %13 = vsyncpa %s12, 0
    loop: start=0, step=1, limit=4
    $region2: #{tpu_custom_call.1} parent=1 // loop_pre_header
      _
    $region3: #{tpu_custom_call.1} parent=1 // loop_header
      %s15 = sphi 0, %s19
      %p16 = scmp.ge.s32.totalorder %s15, 4
      %s22 = sphi 0, %s34
      %s23 = sphi 0, %s30
      %s24 = sphi 0, %s22
      %s25 = sphi 0, %s23
      %s26 = sphi 0, %s24
      %s27 = sphi 0, %s25
      %s35 = sphi 0, %s35
      %s37 = sphi 0, %s35
      %s38 = sphi 0, %s37
      %s52 = sphi 0, %s38
      %s60 = sphi 0, %s62
      %s63 = sphi 0, %s60
      %s64 = sphi 0, %s63
      %s80 = sphi 0, %s64
      %s88 = sphi 0, %s90
      %s91 = sphi 0, %s88
      %s92 = sphi 0, %s91
      %s108 = sphi 0, %s92
    $region4: #{tpu_custom_call.1} parent=1 // loop_header_branch
      %18 = sbr.rel (%p16) target = $region8
    $region5: #{tpu_custom_call.1} parent=1 // loop_body
      %s20 = ssub.s32 %s15, 1
      %s21 = ssub.s32 %s15, 2
      %s28 = sadd.s32 1, %s23
      %p29 = scmp.ge.s32.totalorder %s28, 1
      %s30 = scalar_select %p29, 0, %s28
      %s31 = sadd.s32 1, %s22
      %s32 = scalar_select %p29, %s31, %s22
      %p33 = scmp.ge.s32.totalorder %s32, 2
      %s34 = scalar_select %p33, 0, %s32
      %s36 = sadd.s32 %s35, 1
      %p39 = scmp.eq.s32.totalorder %s15, 1
      %p40 = scmp.ne.s32.totalorder %s35, %s37
      %p41 = scmp.eq.s32.totalorder %s15, 0
      %p42 = por %p40, %p41
      %p43 = scmp.ne.s32.totalorder %s35, %s37
      %p44 = scmp.eq.s32.totalorder %s20, 1
      %p45 = por %p43, %p44
      %p46 = scmp.ne.s32.totalorder %s37, %s38
      %p47 = scmp.eq.s32.totalorder %s20, 0
      %p48 = por %p46, %p47
      %p49 = scmp.ne.s32.totalorder %s37, %s38
      %p50 = scmp.eq.s32.totalorder %s21, 1
      %p51 = por %p49, %p50
      %p53 = scmp.ne.s32.totalorder %s38, %s52
      %p54 = scmp.eq.s32.totalorder %s21, 0
      %p55 = por %p53, %p54
      %s56 = ssub.s32 %s22, %s34
      %s57 = ssub.s32 %s23, %s30
      %s58 = sor.u32 %s56, %s57
      %p59 = scmp.eq.s32.totalorder %s58, 0
      %s61 = sadd.s32 %s60, 1
      %s62 = scalar_select %p59, %s60, %s61
      %p65 = pneg %p59
      %p66 = scmp.eq.s32.totalorder %s15, 1
      %p67 = por %p65, %p66
      %p68 = scmp.ne.s32.totalorder %s60, %s63
      %p69 = scmp.eq.s32.totalorder %s15, 0
      %p70 = por %p68, %p69
      %p71 = scmp.ne.s32.totalorder %s60, %s63
      %p72 = scmp.eq.s32.totalorder %s20, 1
      %p73 = por %p71, %p72
      %p74 = scmp.ne.s32.totalorder %s63, %s64
      %p75 = scmp.eq.s32.totalorder %s20, 0
      %p76 = por %p74, %p75
      %p77 = scmp.ne.s32.totalorder %s63, %s64
      %p78 = scmp.eq.s32.totalorder %s21, 1
      %p79 = por %p77, %p78
      %p81 = scmp.ne.s32.totalorder %s64, %s80
      %p82 = scmp.eq.s32.totalorder %s21, 0
      %p83 = por %p81, %p82
      %s84 = ssub.s32 %s22, %s34
      %s85 = ssub.s32 %s23, %s30
      %s86 = sor.u32 %s84, %s85
      %p87 = scmp.eq.s32.totalorder %s86, 0
      %s89 = sadd.s32 %s88, 1
      %s90 = scalar_select %p87, %s88, %s89
      %p93 = pneg %p87
      %p94 = scmp.eq.s32.totalorder %s15, 1
      %p95 = por %p93, %p94
      %p96 = scmp.ne.s32.totalorder %s88, %s91
      %p97 = scmp.eq.s32.totalorder %s15, 0
      %p98 = por %p96, %p97
      %p99 = scmp.ne.s32.totalorder %s88, %s91
      %p100 = scmp.eq.s32.totalorder %s20, 1
      %p101 = por %p99, %p100
      %p102 = scmp.ne.s32.totalorder %s91, %s92
      %p103 = scmp.eq.s32.totalorder %s20, 0
      %p104 = por %p102, %p103
      %p105 = scmp.ne.s32.totalorder %s91, %s92
      %p106 = scmp.eq.s32.totalorder %s21, 1
      %p107 = por %p105, %p106
      %p109 = scmp.ne.s32.totalorder %s92, %s108
      %p110 = scmp.eq.s32.totalorder %s21, 0
      %p111 = por %p109, %p110
      %p112 = scmp.le.s32.totalorder 1, %s15
      %p113 = scmp.lt.s32.totalorder %s15, 3
      %p114 = pnand %p112, %p113
      %p115 = pneg %p114
      // Predicated region
      $region9: #{tpu_custom_call.1} parent=5 // pred_check
        _
      $region10: #{tpu_custom_call.1} parent=5 // pred_check_branch
        %117 = sbr.rel (%p114) target = $region12
      $region11: #{tpu_custom_call.1} parent=5 // pred_region
        %s118 = ssub.s32 %s15, 1
        // Predicated region
        $region13: #{tpu_custom_call.1} parent=11 // pred_check
          %p119 = pneg %p48
        $region14: #{tpu_custom_call.1} parent=11 // pred_check_branch
          %121 = sbr.rel (%p119) target = $region16
        $region15: #{tpu_custom_call.1} parent=11 // pred_region
          %123 = vsyncadd [#allocation5], 0
          %s125 = sshll.u32 %s0, 4
          %s126 = int_to_ptr.hbm [resolvable:$true] %s125
          %128 = dma.hbm_to_smem %s126, 128, [#allocation2], [#allocation5]
        $region16: #{tpu_custom_call.1} parent=11 // pred_fallthru
          _
      $region12: #{tpu_custom_call.1} parent=5 // pred_fallthru
        _
      %p129 = scmp.lt.s32.totalorder %s15, 2
      // Predicated region
      $region17: #{tpu_custom_call.1} parent=5 // pred_check
        %p130 = pneg %p129
      $region18: #{tpu_custom_call.1} parent=5 // pred_check_branch
        %132 = sbr.rel (%p130) target = $region20
      $region19: #{tpu_custom_call.1} parent=5 // pred_region
        // Predicated region
        $region21: #{tpu_custom_call.1} parent=19 // pred_check
          %p133 = pneg %p70
        $region22: #{tpu_custom_call.1} parent=19 // pred_check_branch
          %135 = sbr.rel (%p133) target = $region24
        $region23: #{tpu_custom_call.1} parent=19 // pred_region
          %s136 = sand.u32 %s60, 1
          %s137 = scalar_lea.sflag [#allocation3], %s136
          %s138 = sand.u32 %s60, 1
          %s139 = smul.addr %s138, 16
          %s140 = scalar_lea.vmem [#allocation6], %s139
          %s141 = smul.u32 2, %s23
          %143 = vsyncadd %s137, 0
          %s144 = smul.addr %s22, 2
          %s145 = sadd.s32 %s141, %s144
          %s146 = smul.addr %s145, 8
          %s147 = scalar_lea.hbm %s1, %s146
          %s148 = sshll.u32 %s147, 4
          %s149 = int_to_ptr.hbm [resolvable:$true] %s148
          %s150 = sshll.u32 %s140, 4
          %s151 = int_to_ptr.vmem [resolvable:$true] %s150
          %156 = dma.hbm_to_vmem [thread:$0]  %s149, 256, %s151, %s137, 128, 128, 8
        $region24: #{tpu_custom_call.1} parent=19 // pred_fallthru
          _
      $region20: #{tpu_custom_call.1} parent=5 // pred_fallthru
        _
      %p157 = scmp.le.s32.totalorder 1, %s15
      %p158 = scmp.lt.s32.totalorder %s15, 3
      %p159 = pnand %p157, %p158
      %p160 = pneg %p159
      // Predicated region
      $region25: #{tpu_custom_call.1} parent=5 // pred_check
        _
      $region26: #{tpu_custom_call.1} parent=5 // pred_check_branch
        %162 = sbr.rel (%p159) target = $region28
      $region27: #{tpu_custom_call.1} parent=5 // pred_region
        %s163 = ssub.s32 %s15, 1
        // Predicated region
        $region29: #{tpu_custom_call.1} parent=27 // pred_check
          %p164 = pneg %p48
        $region30: #{tpu_custom_call.1} parent=27 // pred_check_branch
          %166 = sbr.rel (%p164) target = $region32
        $region31: #{tpu_custom_call.1} parent=27 // pred_region
          %168 = dma.done [#allocation5], 128
        $region32: #{tpu_custom_call.1} parent=27 // pred_fallthru
          _
        %s169 = sand.u32 %s63, 1
        %s170 = scalar_lea.sflag [#allocation3], %s169
        %s171 = sand.u32 %s63, 1
        %s172 = smul.addr %s171, 16
        %s173 = scalar_lea.vmem [#allocation6], %s172
        // Predicated region
        $region33: #{tpu_custom_call.1} parent=27 // pred_check
          %p174 = pneg %p76
        $region34: #{tpu_custom_call.1} parent=27 // pred_check_branch
          %176 = sbr.rel (%p174) target = $region36
        $region35: #{tpu_custom_call.1} parent=27 // pred_region
          %178 = dma.done %s170, 256
        $region36: #{tpu_custom_call.1} parent=27 // pred_fallthru
          _
        %179 = sfence
        %p180 = pneg %p48
        %p181 = pneg %p45
        %s182 = sand.u32 %s63, 1
        %s183 = scalar_lea.sflag [#allocation3], %s182
        %s184 = sand.u32 %s63, 1
        %s185 = smul.addr %s184, 16
        %s186 = scalar_lea.vmem [#allocation6], %s185
        %p187 = pneg %p76
        %p188 = pneg %p73
        %p189 = pneg %p104
        %p190 = pneg %p101
        %s191 = sand.u32 %s91, 1
        %s192 = scalar_lea.sflag [#allocation4], %s191
        %s193 = sand.u32 %s91, 1
        %s194 = smul.addr %s193, 256
        %s195 = scalar_lea.vmem [#allocation7], %s194
        %s196 = smul.u32 2, %s25
        %s197 = smul.u32 2, %s25
        %v198 = vld [vmem:[%s173] sm:$0xff]
        %v199 = vld [vmem:[%s173 + $0x8] sm:$0xff]
        %v200 = vlaneseq
        %v201 = vand.u32 %v200, 127
        %vm202 = vcmp.lt.s32.totalorder %v201, 126
        %vm203 = vcmp.lt.s32.totalorder %v201, 124
        %204 = vrot.lane.b32.xlu0 %v198, 126
        %v205 = vpop.permute.xlu0 %204
        %206 = vrot.lane.b32.xlu0 %v199, 126
        %v207 = vpop.permute.xlu0 %206
        %v208 = vsel %vm202, %v205, 0.0
        %v209 = vsel %vm202, %v207, 0.0
        %210 = vrot.lane.b32.xlu0 %v198, 124
        %v211 = vpop.permute.xlu0 %210
        %212 = vrot.lane.b32.xlu0 %v199, 124
        %v213 = vpop.permute.xlu0 %212
        %v214 = vsel %vm203, %v211, 0.0
        %v215 = vsel %vm203, %v213, 0.0
        %v216 = vsel %vm202, 1, 0
        %v217 = vcvt.s32.f32 %v216
        %v218 = vsel %vm203, 1, 0
        %v219 = vcvt.s32.f32 %v218
        %s220 = sld [smem:[#allocation2]]
        %s221 = sld [smem:[#allocation2 + $0x80]]
        %s222 = sld [smem:[#allocation2 + $0x100]]
        %s223 = sld [smem:[#allocation2 + $0x180]]
        %s224 = sld [smem:[#allocation2 + $0x200]]
        %s225 = sld [smem:[#allocation2 + $0x280]]
        %v226 = vstv %s220
        %v227 = vmul.f32 %v198, %v226
        %v228 = vmul.f32 %v199, %v226
        %v229 = vstv %s221
        %v230 = vmul.f32 %v208, %v229
        %v231 = vmul.f32 %v209, %v229
        %v232 = vadd.f32 %v227, %v230
        %v233 = vadd.f32 %v228, %v231
        %v234 = vstv %s222
        %v235 = vmul.f32 %v214, %v234
        %v236 = vmul.f32 %v215, %v234
        %v237 = vadd.f32 %v232, %v235
        %v238 = vadd.f32 %v233, %v236
        %v239 = vstv %s224
        %v240 = vmul.f32 %v217, %v239
        %v241 = vadd.f32 %v237, %v240
        %v242 = vadd.f32 %v238, %v240
        %v243 = vstv %s225
        %v244 = vmul.f32 %v219, %v243
        %v245 = vadd.f32 %v241, %v244
        %v246 = vadd.f32 %v242, %v244
        %v247 = vstv %s223
        %v248 = vadd.f32 %v245, %v247
        %v249 = vadd.f32 %v246, %v247
        %250 = vst [vmem:[%s195] sm:$0xff] %v248
        %251 = vst [vmem:[%s195 + $0x8] sm:$0xff] %v249
        %s252 = sld [smem:[#allocation2 + $0x1]]
        %s253 = sld [smem:[#allocation2 + $0x81]]
        %s254 = sld [smem:[#allocation2 + $0x101]]
        %s255 = sld [smem:[#allocation2 + $0x181]]
        %s256 = sld [smem:[#allocation2 + $0x201]]
        %s257 = sld [smem:[#allocation2 + $0x281]]
        %v258 = vstv %s252
        %v259 = vmul.f32 %v198, %v258
        %v260 = vmul.f32 %v199, %v258
        %v261 = vstv %s253
        %v262 = vmul.f32 %v208, %v261
        %v263 = vmul.f32 %v209, %v261
        %v264 = vadd.f32 %v259, %v262
        %v265 = vadd.f32 %v260, %v263
        %v266 = vstv %s254
        %v267 = vmul.f32 %v214, %v266
        %v268 = vmul.f32 %v215, %v266
        %v269 = vadd.f32 %v264, %v267
        %v270 = vadd.f32 %v265, %v268
        %v271 = vstv %s256
        %v272 = vmul.f32 %v217, %v271
        %v273 = vadd.f32 %v269, %v272
        %v274 = vadd.f32 %v270, %v272
        %v275 = vstv %s257
        %v276 = vmul.f32 %v219, %v275
        %v277 = vadd.f32 %v273, %v276
        %v278 = vadd.f32 %v274, %v276
        %v279 = vstv %s255
        %v280 = vadd.f32 %v277, %v279
        %v281 = vadd.f32 %v278, %v279
        %s282 = scalar_lea.vmem %s195, 16 [#allocation7]
        %283 = vst [vmem:[%s282] sm:$0xff] %v280
        %284 = vst [vmem:[%s282 + $0x8] sm:$0xff] %v281
        %s285 = sld [smem:[#allocation2 + $0x2]]
        %s286 = sld [smem:[#allocation2 + $0x82]]
        %s287 = sld [smem:[#allocation2 + $0x102]]
        %s288 = sld [smem:[#allocation2 + $0x182]]
        %s289 = sld [smem:[#allocation2 + $0x202]]
        %s290 = sld [smem:[#allocation2 + $0x282]]
        %v291 = vstv %s285
        %v292 = vmul.f32 %v198, %v291
        %v293 = vmul.f32 %v199, %v291
        %v294 = vstv %s286
        %v295 = vmul.f32 %v208, %v294
        %v296 = vmul.f32 %v209, %v294
        %v297 = vadd.f32 %v292, %v295
        %v298 = vadd.f32 %v293, %v296
        %v299 = vstv %s287
        %v300 = vmul.f32 %v214, %v299
        %v301 = vmul.f32 %v215, %v299
        %v302 = vadd.f32 %v297, %v300
        %v303 = vadd.f32 %v298, %v301
        %v304 = vstv %s289
        %v305 = vmul.f32 %v217, %v304
        %v306 = vadd.f32 %v302, %v305
        %v307 = vadd.f32 %v303, %v305
        %v308 = vstv %s290
        %v309 = vmul.f32 %v219, %v308
        %v310 = vadd.f32 %v306, %v309
        %v311 = vadd.f32 %v307, %v309
        %v312 = vstv %s288
        %v313 = vadd.f32 %v310, %v312
        %v314 = vadd.f32 %v311, %v312
        %s315 = scalar_lea.vmem %s195, 32 [#allocation7]
        %316 = vst [vmem:[%s315] sm:$0xff] %v313
        %317 = vst [vmem:[%s315 + $0x8] sm:$0xff] %v314
        %s318 = sld [smem:[#allocation2 + $0x3]]
        %s319 = sld [smem:[#allocation2 + $0x83]]
        %s320 = sld [smem:[#allocation2 + $0x103]]
        %s321 = sld [smem:[#allocation2 + $0x183]]
        %s322 = sld [smem:[#allocation2 + $0x203]]
        %s323 = sld [smem:[#allocation2 + $0x283]]
        %v324 = vstv %s318
        %v325 = vmul.f32 %v198, %v324
        %v326 = vmul.f32 %v199, %v324
        %v327 = vstv %s319
        %v328 = vmul.f32 %v208, %v327
        %v329 = vmul.f32 %v209, %v327
        %v330 = vadd.f32 %v325, %v328
        %v331 = vadd.f32 %v326, %v329
        %v332 = vstv %s320
        %v333 = vmul.f32 %v214, %v332
        %v334 = vmul.f32 %v215, %v332
        %v335 = vadd.f32 %v330, %v333
        %v336 = vadd.f32 %v331, %v334
        %v337 = vstv %s322
        %v338 = vmul.f32 %v217, %v337
        %v339 = vadd.f32 %v335, %v338
        %v340 = vadd.f32 %v336, %v338
        %v341 = vstv %s323
        %v342 = vmul.f32 %v219, %v341
        %v343 = vadd.f32 %v339, %v342
        %v344 = vadd.f32 %v340, %v342
        %v345 = vstv %s321
        %v346 = vadd.f32 %v343, %v345
        %v347 = vadd.f32 %v344, %v345
        %s348 = scalar_lea.vmem %s195, 48 [#allocation7]
        %349 = vst [vmem:[%s348] sm:$0xff] %v346
        %350 = vst [vmem:[%s348 + $0x8] sm:$0xff] %v347
        %s351 = sld [smem:[#allocation2 + $0x4]]
        %s352 = sld [smem:[#allocation2 + $0x84]]
        %s353 = sld [smem:[#allocation2 + $0x104]]
        %s354 = sld [smem:[#allocation2 + $0x184]]
        %s355 = sld [smem:[#allocation2 + $0x204]]
        %s356 = sld [smem:[#allocation2 + $0x284]]
        %v357 = vstv %s351
        %v358 = vmul.f32 %v198, %v357
        %v359 = vmul.f32 %v199, %v357
        %v360 = vstv %s352
        %v361 = vmul.f32 %v208, %v360
        %v362 = vmul.f32 %v209, %v360
        %v363 = vadd.f32 %v358, %v361
        %v364 = vadd.f32 %v359, %v362
        %v365 = vstv %s353
        %v366 = vmul.f32 %v214, %v365
        %v367 = vmul.f32 %v215, %v365
        %v368 = vadd.f32 %v363, %v366
        %v369 = vadd.f32 %v364, %v367
        %v370 = vstv %s355
        %v371 = vmul.f32 %v217, %v370
        %v372 = vadd.f32 %v368, %v371
        %v373 = vadd.f32 %v369, %v371
        %v374 = vstv %s356
        %v375 = vmul.f32 %v219, %v374
        %v376 = vadd.f32 %v372, %v375
        %v377 = vadd.f32 %v373, %v375
        %v378 = vstv %s354
        %v379 = vadd.f32 %v376, %v378
        %v380 = vadd.f32 %v377, %v378
        %s381 = scalar_lea.vmem %s195, 64 [#allocation7]
        %382 = vst [vmem:[%s381] sm:$0xff] %v379
        %383 = vst [vmem:[%s381 + $0x8] sm:$0xff] %v380
        %s384 = sld [smem:[#allocation2 + $0x5]]
        %s385 = sld [smem:[#allocation2 + $0x85]]
        %s386 = sld [smem:[#allocation2 + $0x105]]
        %s387 = sld [smem:[#allocation2 + $0x185]]
        %s388 = sld [smem:[#allocation2 + $0x205]]
        %s389 = sld [smem:[#allocation2 + $0x285]]
        %v390 = vstv %s384
        %v391 = vmul.f32 %v198, %v390
        %v392 = vmul.f32 %v199, %v390
        %v393 = vstv %s385
        %v394 = vmul.f32 %v208, %v393
        %v395 = vmul.f32 %v209, %v393
        %v396 = vadd.f32 %v391, %v394
        %v397 = vadd.f32 %v392, %v395
        %v398 = vstv %s386
        %v399 = vmul.f32 %v214, %v398
        %v400 = vmul.f32 %v215, %v398
        %v401 = vadd.f32 %v396, %v399
        %v402 = vadd.f32 %v397, %v400
        %v403 = vstv %s388
        %v404 = vmul.f32 %v217, %v403
        %v405 = vadd.f32 %v401, %v404
        %v406 = vadd.f32 %v402, %v404
        %v407 = vstv %s389
        %v408 = vmul.f32 %v219, %v407
        %v409 = vadd.f32 %v405, %v408
        %v410 = vadd.f32 %v406, %v408
        %v411 = vstv %s387
        %v412 = vadd.f32 %v409, %v411
        %v413 = vadd.f32 %v410, %v411
        %s414 = scalar_lea.vmem %s195, 80 [#allocation7]
        %415 = vst [vmem:[%s414] sm:$0xff] %v412
        %416 = vst [vmem:[%s414 + $0x8] sm:$0xff] %v413
        %s417 = sld [smem:[#allocation2 + $0x6]]
        %s418 = sld [smem:[#allocation2 + $0x86]]
        %s419 = sld [smem:[#allocation2 + $0x106]]
        %s420 = sld [smem:[#allocation2 + $0x186]]
        %s421 = sld [smem:[#allocation2 + $0x206]]
        %s422 = sld [smem:[#allocation2 + $0x286]]
        %v423 = vstv %s417
        %v424 = vmul.f32 %v198, %v423
        %v425 = vmul.f32 %v199, %v423
        %v426 = vstv %s418
        %v427 = vmul.f32 %v208, %v426
        %v428 = vmul.f32 %v209, %v426
        %v429 = vadd.f32 %v424, %v427
        %v430 = vadd.f32 %v425, %v428
        %v431 = vstv %s419
        %v432 = vmul.f32 %v214, %v431
        %v433 = vmul.f32 %v215, %v431
        %v434 = vadd.f32 %v429, %v432
        %v435 = vadd.f32 %v430, %v433
        %v436 = vstv %s421
        %v437 = vmul.f32 %v217, %v436
        %v438 = vadd.f32 %v434, %v437
        %v439 = vadd.f32 %v435, %v437
        %v440 = vstv %s422
        %v441 = vmul.f32 %v219, %v440
        %v442 = vadd.f32 %v438, %v441
        %v443 = vadd.f32 %v439, %v441
        %v444 = vstv %s420
        %v445 = vadd.f32 %v442, %v444
        %v446 = vadd.f32 %v443, %v444
        %s447 = scalar_lea.vmem %s195, 96 [#allocation7]
        %448 = vst [vmem:[%s447] sm:$0xff] %v445
        %449 = vst [vmem:[%s447 + $0x8] sm:$0xff] %v446
        %s450 = sld [smem:[#allocation2 + $0x7]]
        %s451 = sld [smem:[#allocation2 + $0x87]]
        %s452 = sld [smem:[#allocation2 + $0x107]]
        %s453 = sld [smem:[#allocation2 + $0x187]]
        %s454 = sld [smem:[#allocation2 + $0x207]]
        %s455 = sld [smem:[#allocation2 + $0x287]]
        %v456 = vstv %s450
        %v457 = vmul.f32 %v198, %v456
        %v458 = vmul.f32 %v199, %v456
        %v459 = vstv %s451
        %v460 = vmul.f32 %v208, %v459
        %v461 = vmul.f32 %v209, %v459
        %v462 = vadd.f32 %v457, %v460
        %v463 = vadd.f32 %v458, %v461
        %v464 = vstv %s452
        %v465 = vmul.f32 %v214, %v464
        %v466 = vmul.f32 %v215, %v464
        %v467 = vadd.f32 %v462, %v465
        %v468 = vadd.f32 %v463, %v466
        %v469 = vstv %s454
        %v470 = vmul.f32 %v217, %v469
        %v471 = vadd.f32 %v467, %v470
        %v472 = vadd.f32 %v468, %v470
        %v473 = vstv %s455
        %v474 = vmul.f32 %v219, %v473
        %v475 = vadd.f32 %v471, %v474
        %v476 = vadd.f32 %v472, %v474
        %v477 = vstv %s453
        %v478 = vadd.f32 %v475, %v477
        %v479 = vadd.f32 %v476, %v477
        %s480 = scalar_lea.vmem %s195, 112 [#allocation7]
        %481 = vst [vmem:[%s480] sm:$0xff] %v478
        %482 = vst [vmem:[%s480 + $0x8] sm:$0xff] %v479
        %s483 = sld [smem:[#allocation2 + $0x8]]
        %s484 = sld [smem:[#allocation2 + $0x88]]
        %s485 = sld [smem:[#allocation2 + $0x108]]
        %s486 = sld [smem:[#allocation2 + $0x188]]
        %s487 = sld [smem:[#allocation2 + $0x208]]
        %s488 = sld [smem:[#allocation2 + $0x288]]
        %v489 = vstv %s483
        %v490 = vmul.f32 %v198, %v489
        %v491 = vmul.f32 %v199, %v489
        %v492 = vstv %s484
        %v493 = vmul.f32 %v208, %v492
        %v494 = vmul.f32 %v209, %v492
        %v495 = vadd.f32 %v490, %v493
        %v496 = vadd.f32 %v491, %v494
        %v497 = vstv %s485
        %v498 = vmul.f32 %v214, %v497
        %v499 = vmul.f32 %v215, %v497
        %v500 = vadd.f32 %v495, %v498
        %v501 = vadd.f32 %v496, %v499
        %v502 = vstv %s487
        %v503 = vmul.f32 %v217, %v502
        %v504 = vadd.f32 %v500, %v503
        %v505 = vadd.f32 %v501, %v503
        %v506 = vstv %s488
        %v507 = vmul.f32 %v219, %v506
        %v508 = vadd.f32 %v504, %v507
        %v509 = vadd.f32 %v505, %v507
        %v510 = vstv %s486
        %v511 = vadd.f32 %v508, %v510
        %v512 = vadd.f32 %v509, %v510
        %s513 = scalar_lea.vmem %s195, 128 [#allocation7]
        %514 = vst [vmem:[%s513] sm:$0xff] %v511
        %515 = vst [vmem:[%s513 + $0x8] sm:$0xff] %v512
        %s516 = sld [smem:[#allocation2 + $0x9]]
        %s517 = sld [smem:[#allocation2 + $0x89]]
        %s518 = sld [smem:[#allocation2 + $0x109]]
        %s519 = sld [smem:[#allocation2 + $0x189]]
        %s520 = sld [smem:[#allocation2 + $0x209]]
        %s521 = sld [smem:[#allocation2 + $0x289]]
        %v522 = vstv %s516
        %v523 = vmul.f32 %v198, %v522
        %v524 = vmul.f32 %v199, %v522
        %v525 = vstv %s517
        %v526 = vmul.f32 %v208, %v525
        %v527 = vmul.f32 %v209, %v525
        %v528 = vadd.f32 %v523, %v526
        %v529 = vadd.f32 %v524, %v527
        %v530 = vstv %s518
        %v531 = vmul.f32 %v214, %v530
        %v532 = vmul.f32 %v215, %v530
        %v533 = vadd.f32 %v528, %v531
        %v534 = vadd.f32 %v529, %v532
        %v535 = vstv %s520
        %v536 = vmul.f32 %v217, %v535
        %v537 = vadd.f32 %v533, %v536
        %v538 = vadd.f32 %v534, %v536
        %v539 = vstv %s521
        %v540 = vmul.f32 %v219, %v539
        %v541 = vadd.f32 %v537, %v540
        %v542 = vadd.f32 %v538, %v540
        %v543 = vstv %s519
        %v544 = vadd.f32 %v541, %v543
        %v545 = vadd.f32 %v542, %v543
        %s546 = scalar_lea.vmem %s195, 144 [#allocation7]
        %547 = vst [vmem:[%s546] sm:$0xff] %v544
        %548 = vst [vmem:[%s546 + $0x8] sm:$0xff] %v545
        %s549 = sld [smem:[#allocation2 + $0xa]]
        %s550 = sld [smem:[#allocation2 + $0x8a]]
        %s551 = sld [smem:[#allocation2 + $0x10a]]
        %s552 = sld [smem:[#allocation2 + $0x18a]]
        %s553 = sld [smem:[#allocation2 + $0x20a]]
        %s554 = sld [smem:[#allocation2 + $0x28a]]
        %v555 = vstv %s549
        %v556 = vmul.f32 %v198, %v555
        %v557 = vmul.f32 %v199, %v555
        %v558 = vstv %s550
        %v559 = vmul.f32 %v208, %v558
        %v560 = vmul.f32 %v209, %v558
        %v561 = vadd.f32 %v556, %v559
        %v562 = vadd.f32 %v557, %v560
        %v563 = vstv %s551
        %v564 = vmul.f32 %v214, %v563
        %v565 = vmul.f32 %v215, %v563
        %v566 = vadd.f32 %v561, %v564
        %v567 = vadd.f32 %v562, %v565
        %v568 = vstv %s553
        %v569 = vmul.f32 %v217, %v568
        %v570 = vadd.f32 %v566, %v569
        %v571 = vadd.f32 %v567, %v569
        %v572 = vstv %s554
        %v573 = vmul.f32 %v219, %v572
        %v574 = vadd.f32 %v570, %v573
        %v575 = vadd.f32 %v571, %v573
        %v576 = vstv %s552
        %v577 = vadd.f32 %v574, %v576
        %v578 = vadd.f32 %v575, %v576
        %s579 = scalar_lea.vmem %s195, 160 [#allocation7]
        %580 = vst [vmem:[%s579] sm:$0xff] %v577
        %581 = vst [vmem:[%s579 + $0x8] sm:$0xff] %v578
        %s582 = sld [smem:[#allocation2 + $0xb]]
        %s583 = sld [smem:[#allocation2 + $0x8b]]
        %s584 = sld [smem:[#allocation2 + $0x10b]]
        %s585 = sld [smem:[#allocation2 + $0x18b]]
        %s586 = sld [smem:[#allocation2 + $0x20b]]
        %s587 = sld [smem:[#allocation2 + $0x28b]]
        %v588 = vstv %s582
        %v589 = vmul.f32 %v198, %v588
        %v590 = vmul.f32 %v199, %v588
        %v591 = vstv %s583
        %v592 = vmul.f32 %v208, %v591
        %v593 = vmul.f32 %v209, %v591
        %v594 = vadd.f32 %v589, %v592
        %v595 = vadd.f32 %v590, %v593
        %v596 = vstv %s584
        %v597 = vmul.f32 %v214, %v596
        %v598 = vmul.f32 %v215, %v596
        %v599 = vadd.f32 %v594, %v597
        %v600 = vadd.f32 %v595, %v598
        %v601 = vstv %s586
        %v602 = vmul.f32 %v217, %v601
        %v603 = vadd.f32 %v599, %v602
        %v604 = vadd.f32 %v600, %v602
        %v605 = vstv %s587
        %v606 = vmul.f32 %v219, %v605
        %v607 = vadd.f32 %v603, %v606
        %v608 = vadd.f32 %v604, %v606
        %v609 = vstv %s585
        %v610 = vadd.f32 %v607, %v609
        %v611 = vadd.f32 %v608, %v609
        %s612 = scalar_lea.vmem %s195, 176 [#allocation7]
        %613 = vst [vmem:[%s612] sm:$0xff] %v610
        %614 = vst [vmem:[%s612 + $0x8] sm:$0xff] %v611
        %s615 = sld [smem:[#allocation2 + $0xc]]
        %s616 = sld [smem:[#allocation2 + $0x8c]]
        %s617 = sld [smem:[#allocation2 + $0x10c]]
        %s618 = sld [smem:[#allocation2 + $0x18c]]
        %s619 = sld [smem:[#allocation2 + $0x20c]]
        %s620 = sld [smem:[#allocation2 + $0x28c]]
        %v621 = vstv %s615
        %v622 = vmul.f32 %v198, %v621
        %v623 = vmul.f32 %v199, %v621
        %v624 = vstv %s616
        %v625 = vmul.f32 %v208, %v624
        %v626 = vmul.f32 %v209, %v624
        %v627 = vadd.f32 %v622, %v625
        %v628 = vadd.f32 %v623, %v626
        %v629 = vstv %s617
        %v630 = vmul.f32 %v214, %v629
        %v631 = vmul.f32 %v215, %v629
        %v632 = vadd.f32 %v627, %v630
        %v633 = vadd.f32 %v628, %v631
        %v634 = vstv %s619
        %v635 = vmul.f32 %v217, %v634
        %v636 = vadd.f32 %v632, %v635
        %v637 = vadd.f32 %v633, %v635
        %v638 = vstv %s620
        %v639 = vmul.f32 %v219, %v638
        %v640 = vadd.f32 %v636, %v639
        %v641 = vadd.f32 %v637, %v639
        %v642 = vstv %s618
        %v643 = vadd.f32 %v640, %v642
        %v644 = vadd.f32 %v641, %v642
        %s645 = scalar_lea.vmem %s195, 192 [#allocation7]
        %646 = vst [vmem:[%s645] sm:$0xff] %v643
        %647 = vst [vmem:[%s645 + $0x8] sm:$0xff] %v644
        %s648 = sld [smem:[#allocation2 + $0xd]]
        %s649 = sld [smem:[#allocation2 + $0x8d]]
        %s650 = sld [smem:[#allocation2 + $0x10d]]
        %s651 = sld [smem:[#allocation2 + $0x18d]]
        %s652 = sld [smem:[#allocation2 + $0x20d]]
        %s653 = sld [smem:[#allocation2 + $0x28d]]
        %v654 = vstv %s648
        %v655 = vmul.f32 %v198, %v654
        %v656 = vmul.f32 %v199, %v654
        %v657 = vstv %s649
        %v658 = vmul.f32 %v208, %v657
        %v659 = vmul.f32 %v209, %v657
        %v660 = vadd.f32 %v655, %v658
        %v661 = vadd.f32 %v656, %v659
        %v662 = vstv %s650
        %v663 = vmul.f32 %v214, %v662
        %v664 = vmul.f32 %v215, %v662
        %v665 = vadd.f32 %v660, %v663
        %v666 = vadd.f32 %v661, %v664
        %v667 = vstv %s652
        %v668 = vmul.f32 %v217, %v667
        %v669 = vadd.f32 %v665, %v668
        %v670 = vadd.f32 %v666, %v668
        %v671 = vstv %s653
        %v672 = vmul.f32 %v219, %v671
        %v673 = vadd.f32 %v669, %v672
        %v674 = vadd.f32 %v670, %v672
        %v675 = vstv %s651
        %v676 = vadd.f32 %v673, %v675
        %v677 = vadd.f32 %v674, %v675
        %s678 = scalar_lea.vmem %s195, 208 [#allocation7]
        %679 = vst [vmem:[%s678] sm:$0xff] %v676
        %680 = vst [vmem:[%s678 + $0x8] sm:$0xff] %v677
        %s681 = sld [smem:[#allocation2 + $0xe]]
        %s682 = sld [smem:[#allocation2 + $0x8e]]
        %s683 = sld [smem:[#allocation2 + $0x10e]]
        %s684 = sld [smem:[#allocation2 + $0x18e]]
        %s685 = sld [smem:[#allocation2 + $0x20e]]
        %s686 = sld [smem:[#allocation2 + $0x28e]]
        %v687 = vstv %s681
        %v688 = vmul.f32 %v198, %v687
        %v689 = vmul.f32 %v199, %v687
        %v690 = vstv %s682
        %v691 = vmul.f32 %v208, %v690
        %v692 = vmul.f32 %v209, %v690
        %v693 = vadd.f32 %v688, %v691
        %v694 = vadd.f32 %v689, %v692
        %v695 = vstv %s683
        %v696 = vmul.f32 %v214, %v695
        %v697 = vmul.f32 %v215, %v695
        %v698 = vadd.f32 %v693, %v696
        %v699 = vadd.f32 %v694, %v697
        %v700 = vstv %s685
        %v701 = vmul.f32 %v217, %v700
        %v702 = vadd.f32 %v698, %v701
        %v703 = vadd.f32 %v699, %v701
        %v704 = vstv %s686
        %v705 = vmul.f32 %v219, %v704
        %v706 = vadd.f32 %v702, %v705
        %v707 = vadd.f32 %v703, %v705
        %v708 = vstv %s684
        %v709 = vadd.f32 %v706, %v708
        %v710 = vadd.f32 %v707, %v708
        %s711 = scalar_lea.vmem %s195, 224 [#allocation7]
        %712 = vst [vmem:[%s711] sm:$0xff] %v709
        %713 = vst [vmem:[%s711 + $0x8] sm:$0xff] %v710
        %s714 = sld [smem:[#allocation2 + $0xf]]
        %s715 = sld [smem:[#allocation2 + $0x8f]]
        %s716 = sld [smem:[#allocation2 + $0x10f]]
        %s717 = sld [smem:[#allocation2 + $0x18f]]
        %s718 = sld [smem:[#allocation2 + $0x20f]]
        %s719 = sld [smem:[#allocation2 + $0x28f]]
        %v720 = vstv %s714
        %v721 = vmul.f32 %v198, %v720
        %v722 = vmul.f32 %v199, %v720
        %v723 = vstv %s715
        %v724 = vmul.f32 %v208, %v723
        %v725 = vmul.f32 %v209, %v723
        %v726 = vadd.f32 %v721, %v724
        %v727 = vadd.f32 %v722, %v725
        %v728 = vstv %s716
        %v729 = vmul.f32 %v214, %v728
        %v730 = vmul.f32 %v215, %v728
        %v731 = vadd.f32 %v726, %v729
        %v732 = vadd.f32 %v727, %v730
        %v733 = vstv %s718
        %v734 = vmul.f32 %v217, %v733
        %v735 = vadd.f32 %v731, %v734
        %v736 = vadd.f32 %v732, %v734
        %v737 = vstv %s719
        %v738 = vmul.f32 %v219, %v737
        %v739 = vadd.f32 %v735, %v738
        %v740 = vadd.f32 %v736, %v738
        %v741 = vstv %s717
        %v742 = vadd.f32 %v739, %v741
        %v743 = vadd.f32 %v740, %v741
        %s744 = scalar_lea.vmem %s195, 240 [#allocation7]
        %745 = vst [vmem:[%s744] sm:$0xff] %v742
        %746 = vst [vmem:[%s744 + $0x8] sm:$0xff] %v743
        %s747 = sand.u32 %s91, 1
        %s748 = scalar_lea.sflag [#allocation4], %s747
        %s749 = sand.u32 %s91, 1
        %s750 = smul.addr %s749, 256
        %s751 = scalar_lea.vmem [#allocation7], %s750
        // Predicated region
        $region37: #{tpu_custom_call.1} parent=27 // pred_check
          %p752 = pneg %p101
        $region38: #{tpu_custom_call.1} parent=27 // pred_check_branch
          %754 = sbr.rel (%p752) target = $region40
        $region39: #{tpu_custom_call.1} parent=27 // pred_region
          %s755 = smul.u32 2, %s25
          %757 = vsyncadd %s748, 0
          %s758 = smul.addr %s24, 32
          %s759 = sadd.s32 %s755, %s758
          %s760 = smul.addr %s759, 8
          %s761 = scalar_lea.hbm %s2, %s760
          %s762 = sshll.u32 %s751, 4
          %s763 = int_to_ptr.vmem [resolvable:$true] %s762
          %s764 = sshll.u32 %s761, 4
          %s765 = int_to_ptr.hbm [resolvable:$true] %s764
          %770 = dma.vmem_to_hbm [thread:$0]  %s763, 4096, %s765, %s748, 128, 128, 8
        $region40: #{tpu_custom_call.1} parent=27 // pred_fallthru
          _
      $region28: #{tpu_custom_call.1} parent=5 // pred_fallthru
        _
      %p771 = scmp.le.s32.totalorder 2, %s15
      // Predicated region
      $region41: #{tpu_custom_call.1} parent=5 // pred_check
        %p772 = pneg %p771
      $region42: #{tpu_custom_call.1} parent=5 // pred_check_branch
        %774 = sbr.rel (%p772) target = $region44
      $region43: #{tpu_custom_call.1} parent=5 // pred_region
        %s775 = ssub.s32 %s15, 2
        // Predicated region
        $region45: #{tpu_custom_call.1} parent=43 // pred_check
          %p776 = pneg %p107
        $region46: #{tpu_custom_call.1} parent=43 // pred_check_branch
          %778 = sbr.rel (%p776) target = $region48
        $region47: #{tpu_custom_call.1} parent=43 // pred_region
          %s779 = sand.u32 %s92, 1
          %s780 = scalar_lea.sflag [#allocation4], %s779
          %s781 = sand.u32 %s92, 1
          %s782 = smul.addr %s781, 256
          %s783 = scalar_lea.vmem [#allocation7], %s782
          %785 = dma.done %s780, 4096
        $region48: #{tpu_custom_call.1} parent=43 // pred_fallthru
          _
      $region44: #{tpu_custom_call.1} parent=5 // pred_fallthru
        _
    $region6: #{tpu_custom_call.1} parent=1 // loop_footer
      %s19 = sadd.s32 1, %s15
    $region7: #{tpu_custom_call.1} parent=1 // loop_footer_branch
      %14 = sbr.rel target = $region3
    $region8: #{tpu_custom_call.1} parent=1 // loop_exit
      _
    %786 = vsyncpa [#allocation3], 1
    %s787 = scalar_lea.sflag [#allocation3], 1
    %788 = vsyncpa %s787, 1
    %789 = vsyncpa [#allocation4], 1
    %s790 = scalar_lea.sflag [#allocation4], 1
    %791 = vsyncpa %s790, 1
    %792 = vsyncpa [#allocation5], 1
    %s793 = scalar_lea.sflag [#allocation5], 1
    %794 = vsyncpa %s793, 1

</llo_original>
